<compile_context>
chip_gen: v7x
topology: tpu7x:2x2x1
jax: 0.10.0
libtpu: 0.0.40
codegen_flags: <defaults>
</compile_context>

<pallas_src>
import jax
import jax.numpy as jnp
from jax.experimental import pallas as pl
from jax.experimental.pallas import tpu as pltpu


def _round_up(n, m):
    return ((n + m - 1) // m) * m


def _mlp_kernel(x_ref,
                w1_ref, b1_ref,
                w2_ref, b2_ref,
                w3_ref, b3_ref,
                w4_ref, b4_ref,
                w5_ref, b5_ref,
                w6_ref, b6_ref,
                w7_ref, b7_ref,
                out_ref):
    """Fused 7-layer MLP on one (TB, features) batch tile: (Linear+ReLU) x 6, Linear."""

    def linear(h, w_ref, b_ref):
        # bf16 x bf16 MXU matmul with f32 accumulation; bias add stays in f32.
        return jnp.dot(h, w_ref[...], preferred_element_type=jnp.float32) + b_ref[...]

    def linear_relu(h, w_ref, b_ref):
        # ReLU in f32, then cast back to bf16 as the next MXU operand.
        return jnp.maximum(linear(h, w_ref, b_ref), 0.0).astype(jnp.bfloat16)

    # f32 -> bf16 cast happens in-kernel (VPU, hidden under the matmuls).
    h = x_ref[...].astype(jnp.bfloat16)  # (TB, F) bf16
    h = linear_relu(h, w1_ref, b1_ref)   # (TB, 32)
    h = linear_relu(h, w2_ref, b2_ref)   # (TB, 64)
    h = linear_relu(h, w3_ref, b3_ref)   # (TB, 128)
    h = linear_relu(h, w4_ref, b4_ref)   # (TB, 128)
    h = linear_relu(h, w5_ref, b5_ref)   # (TB, 64)
    h = linear_relu(h, w6_ref, b6_ref)   # (TB, 32)
    # Narrow logits, written straight to the (b_pad, number_classes) output.
    out_ref[...] = linear(h, w7_ref, b7_ref).astype(out_ref.dtype)


def mpalaouras_forward(x, params, *, batch_tile=1024):
    """x: (B, features) f32. params: list of (W, b), W: (in, out) f32, b: (1, out) f32."""
    B, F = x.shape
    number_classes = params[-1][0].shape[1]

    # Batch tile: multiple of 32 (bf16 packs 16 rows/vreg; 32 keeps everything aligned),
    # capped at `batch_tile`, and capped at ~B/2 so the grid keeps >= 2 steps when
    # possible (lets v7x shard the "parallel" axis across both TensorCores).
    tb = min(batch_tile, _round_up(max(pl.cdiv(B, 2), 32), 32))
    b_pad = _round_up(B, tb)
    grid = (b_pad // tb,)

    # Only zero-pad the batch when B is not already a tile multiple (f32 input; the
    # bf16 cast happens inside the kernel).
    if b_pad != B:
        x_in = jnp.zeros((b_pad, F), x.dtype).at[:B].set(x)
    else:
        x_in = x

    flat_params = []
    in_specs = [pl.BlockSpec((tb, F), lambda i: (i, 0))]
    for (w, b) in params:
        flat_params.append(w.astype(jnp.bfloat16))     # MXU operand
        flat_params.append(b.astype(jnp.float32))      # bias added to f32 accumulator
        # Constant block index at every grid step -> params stay VMEM-resident.
        # Block shape == full array shape, so the (8,128) divisibility rule is waived.
        in_specs.append(pl.BlockSpec(w.shape, lambda i: (0, 0)))
        in_specs.append(pl.BlockSpec(b.shape, lambda i: (0, 0)))

    out = pl.pallas_call(
        _mlp_kernel,
        out_shape=jax.ShapeDtypeStruct((b_pad, number_classes), jnp.float32),
        grid=grid,
        in_specs=in_specs,
        # Narrow output block: last dim equals the full array dim (legal), so only the
        # useful number_classes columns are DMA'd back to HBM.
        out_specs=pl.BlockSpec((tb, number_classes), lambda i: (i, 0)),
        # TODO(synk): if profiles at very large B still show exposed output writeback,
        # add pipeline_mode=pl.Buffered(3) on the out/x BlockSpecs.
        compiler_params=pltpu.CompilerParams(
            # Batch axis is independent across steps -> megacore-shardable on v7x.
            dimension_semantics=("parallel",),
            # Budget at TB=1024: ~80 KB resident params + 2x (tb,F) f32 in-tiles
            # (~128 KB) + 2x (tb,C) f32 out-tiles (~32 KB) + f32 intermediates
            # (<= ~1 MB live). 16 MiB leaves ample headroom on v5e/v6e/v7x.
            vmem_limit_bytes=16 * 1024 * 1024,
        ),
    )(x_in, *flat_params)

    return out[:B] if b_pad != B else out


def init_params(key, features_number, number_classes):
    """Deterministic init mimicking PyTorch nn.Linear defaults (U[-1/sqrt(in), 1/sqrt(in)])."""
    dims = [features_number, 32, 64, 128, 128, 64, 32, number_classes]
    params = []
    for i in range(len(dims) - 1):
        fan_in, fan_out = dims[i], dims[i + 1]
        key, kw, kb = jax.random.split(key, 3)
        bound = 1.0 / jnp.sqrt(fan_in)
        w = jax.random.uniform(kw, (fan_in, fan_out), jnp.float32, -bound, bound)
        b = jax.random.uniform(kb, (1, fan_out), jnp.float32, -bound, bound)
        params.append((w, b))
    return params


def reference_forward(x, params):
    """Pure-JAX f32 reference (matches the PyTorch module's semantics)."""
    h = x
    for i, (w, b) in enumerate(params):
        h = h @ w + b
        if i < len(params) - 1:
            h = jnp.maximum(h, 0.0)
    return h


if __name__ == "__main__":
    features_number = 16
    number_classes = 4

    key = jax.random.PRNGKey(0)
    key, kx1, kx2 = jax.random.split(key, 3)
    params = init_params(key, features_number, number_classes)

    # Case 1: batch large enough to exercise a multi-step batch grid (2 steps at TB=256).
    batch = 512
    x = jax.random.normal(kx1, (batch, features_number), jnp.float32)
    out = jax.block_until_ready(mpalaouras_forward(x, params))
    ref = reference_forward(x, params)
    assert out.shape == (batch, number_classes)
    # bf16 MXU operands with f32 accumulation -> loosened tolerance vs f32 reference.
    assert jnp.allclose(out, ref, atol=5e-2, rtol=5e-2), "mismatch vs reference (batch=512)"

    # Case 2: small, non-tile-multiple batch exercises the padding/slicing path.
    batch_small = 40
    x_s = jax.random.normal(kx2, (batch_small, features_number), jnp.float32)
    out_s = jax.block_until_ready(mpalaouras_forward(x_s, params))
    ref_s = reference_forward(x_s, params)
    assert out_s.shape == (batch_small, number_classes)
    assert jnp.allclose(out_s, ref_s, atol=5e-2, rtol=5e-2), "mismatch vs reference (batch=40)"

    print("KERNEL_OK")
</pallas_src>

<mosaic_0001>
module attributes {stable_mosaic.version = 11 : i64} {
  func.func @_mlp_kernel(%arg0: i32, %arg1: memref<256x16xf32, #tpu.memory_space<vmem>>, %arg2: memref<16x32xbf16, #tpu.memory_space<vmem>>, %arg3: memref<1x32xf32, #tpu.memory_space<vmem>>, %arg4: memref<32x64xbf16, #tpu.memory_space<vmem>>, %arg5: memref<1x64xf32, #tpu.memory_space<vmem>>, %arg6: memref<64x128xbf16, #tpu.memory_space<vmem>>, %arg7: memref<1x128xf32, #tpu.memory_space<vmem>>, %arg8: memref<128x128xbf16, #tpu.memory_space<vmem>>, %arg9: memref<1x128xf32, #tpu.memory_space<vmem>>, %arg10: memref<128x64xbf16, #tpu.memory_space<vmem>>, %arg11: memref<1x64xf32, #tpu.memory_space<vmem>>, %arg12: memref<64x32xbf16, #tpu.memory_space<vmem>>, %arg13: memref<1x32xf32, #tpu.memory_space<vmem>>, %arg14: memref<32x4xbf16, #tpu.memory_space<vmem>>, %arg15: memref<1x4xf32, #tpu.memory_space<vmem>>, %arg16: memref<256x4xf32, #tpu.memory_space<vmem>>) attributes {dimension_semantics = [#tpu.dimension_semantics<parallel>], iteration_bounds = array<i64: 2>, scalar_prefetch = 0 : i64, scratch_operands = 0 : i64, tpu.core_type = #tpu.core_type<tc>, window_params = [{transform_indices = @transform_0, window_bounds = array<i64: 256, 16>}, {pipeline_mode = #tpu.pipeline_mode<synchronous>, transform_indices = @transform_1, window_bounds = array<i64: 16, 32>}, {pipeline_mode = #tpu.pipeline_mode<synchronous>, transform_indices = @transform_2, window_bounds = array<i64: 1, 32>}, {pipeline_mode = #tpu.pipeline_mode<synchronous>, transform_indices = @transform_3, window_bounds = array<i64: 32, 64>}, {pipeline_mode = #tpu.pipeline_mode<synchronous>, transform_indices = @transform_4, window_bounds = array<i64: 1, 64>}, {pipeline_mode = #tpu.pipeline_mode<synchronous>, transform_indices = @transform_5, window_bounds = array<i64: 64, 128>}, {pipeline_mode = #tpu.pipeline_mode<synchronous>, transform_indices = @transform_6, window_bounds = array<i64: 1, 128>}, {pipeline_mode = #tpu.pipeline_mode<synchronous>, transform_indices = @transform_7, window_bounds = array<i64: 128, 128>}, {pipeline_mode = #tpu.pipeline_mode<synchronous>, transform_indices = @transform_8, window_bounds = array<i64: 1, 128>}, {pipeline_mode = #tpu.pipeline_mode<synchronous>, transform_indices = @transform_9, window_bounds = array<i64: 128, 64>}, {pipeline_mode = #tpu.pipeline_mode<synchronous>, transform_indices = @transform_10, window_bounds = array<i64: 1, 64>}, {pipeline_mode = #tpu.pipeline_mode<synchronous>, transform_indices = @transform_11, window_bounds = array<i64: 64, 32>}, {pipeline_mode = #tpu.pipeline_mode<synchronous>, transform_indices = @transform_12, window_bounds = array<i64: 1, 32>}, {pipeline_mode = #tpu.pipeline_mode<synchronous>, transform_indices = @transform_13, window_bounds = array<i64: 32, 4>}, {pipeline_mode = #tpu.pipeline_mode<synchronous>, transform_indices = @transform_14, window_bounds = array<i64: 1, 4>}, {transform_indices = @transform_15, window_bounds = array<i64: 256, 4>}]} {
    %c0 = arith.constant 0 : index
    %c0_0 = arith.constant 0 : index
    %0 = vector.load %arg1[%c0, %c0_0] : memref<256x16xf32, #tpu.memory_space<vmem>>, vector<256x16xf32>
    %1 = arith.truncf %0 : vector<256x16xf32> to vector<256x16xbf16>
    %c0_1 = arith.constant 0 : index
    %c0_2 = arith.constant 0 : index
    %2 = vector.load %arg2[%c0_1, %c0_2] : memref<16x32xbf16, #tpu.memory_space<vmem>>, vector<16x32xbf16>
    %cst = arith.constant dense<0.000000e+00> : vector<256x32xf32>
    %3 = tpu.matmul %1, %2, %cst {dimension_numbers = #tpu.dot_dimension_numbers<[1], [0], [0], [1], [0, 0, 1, 1], [], []>} : vector<256x16xbf16>, vector<16x32xbf16>, vector<256x32xf32> -> vector<256x32xf32>
    %c0_3 = arith.constant 0 : index
    %c0_4 = arith.constant 0 : index
    %4 = vector.load %arg3[%c0_3, %c0_4] : memref<1x32xf32, #tpu.memory_space<vmem>>, vector<1x32xf32>
    %5 = vector.broadcast %4 : vector<1x32xf32> to vector<256x32xf32>
    %6 = arith.addf %3, %5 : vector<256x32xf32>
    %cst_5 = arith.constant 0.000000e+00 : f32
    %7 = vector.broadcast %cst_5 : f32 to vector<256x32xf32>
    %8 = arith.maximumf %6, %7 : vector<256x32xf32>
    %9 = arith.truncf %8 : vector<256x32xf32> to vector<256x32xbf16>
    %c0_6 = arith.constant 0 : index
    %c0_7 = arith.constant 0 : index
    %10 = vector.load %arg4[%c0_6, %c0_7] : memref<32x64xbf16, #tpu.memory_space<vmem>>, vector<32x64xbf16>
    %cst_8 = arith.constant dense<0.000000e+00> : vector<256x64xf32>
    %11 = tpu.matmul %9, %10, %cst_8 {dimension_numbers = #tpu.dot_dimension_numbers<[1], [0], [0], [1], [0, 0, 1, 1], [], []>} : vector<256x32xbf16>, vector<32x64xbf16>, vector<256x64xf32> -> vector<256x64xf32>
    %c0_9 = arith.constant 0 : index
    %c0_10 = arith.constant 0 : index
    %12 = vector.load %arg5[%c0_9, %c0_10] : memref<1x64xf32, #tpu.memory_space<vmem>>, vector<1x64xf32>
    %13 = vector.broadcast %12 : vector<1x64xf32> to vector<256x64xf32>
    %14 = arith.addf %11, %13 : vector<256x64xf32>
    %cst_11 = arith.constant 0.000000e+00 : f32
    %15 = vector.broadcast %cst_11 : f32 to vector<256x64xf32>
    %16 = arith.maximumf %14, %15 : vector<256x64xf32>
    %17 = arith.truncf %16 : vector<256x64xf32> to vector<256x64xbf16>
    %c0_12 = arith.constant 0 : index
    %c0_13 = arith.constant 0 : index
    %18 = vector.load %arg6[%c0_12, %c0_13] : memref<64x128xbf16, #tpu.memory_space<vmem>>, vector<64x128xbf16>
    %cst_14 = arith.constant dense<0.000000e+00> : vector<256x128xf32>
    %19 = tpu.matmul %17, %18, %cst_14 {dimension_numbers = #tpu.dot_dimension_numbers<[1], [0], [0], [1], [0, 0, 1, 1], [], []>} : vector<256x64xbf16>, vector<64x128xbf16>, vector<256x128xf32> -> vector<256x128xf32>
    %c0_15 = arith.constant 0 : index
    %c0_16 = arith.constant 0 : index
    %20 = vector.load %arg7[%c0_15, %c0_16] : memref<1x128xf32, #tpu.memory_space<vmem>>, vector<1x128xf32>
    %21 = vector.broadcast %20 : vector<1x128xf32> to vector<256x128xf32>
    %22 = arith.addf %19, %21 : vector<256x128xf32>
    %cst_17 = arith.constant 0.000000e+00 : f32
    %23 = vector.broadcast %cst_17 : f32 to vector<256x128xf32>
    %24 = arith.maximumf %22, %23 : vector<256x128xf32>
    %25 = arith.truncf %24 : vector<256x128xf32> to vector<256x128xbf16>
    %c0_18 = arith.constant 0 : index
    %c0_19 = arith.constant 0 : index
    %26 = vector.load %arg8[%c0_18, %c0_19] : memref<128x128xbf16, #tpu.memory_space<vmem>>, vector<128x128xbf16>
    %cst_20 = arith.constant dense<0.000000e+00> : vector<256x128xf32>
    %27 = tpu.matmul %25, %26, %cst_20 {dimension_numbers = #tpu.dot_dimension_numbers<[1], [0], [0], [1], [0, 0, 1, 1], [], []>} : vector<256x128xbf16>, vector<128x128xbf16>, vector<256x128xf32> -> vector<256x128xf32>
    %c0_21 = arith.constant 0 : index
    %c0_22 = arith.constant 0 : index
    %28 = vector.load %arg9[%c0_21, %c0_22] : memref<1x128xf32, #tpu.memory_space<vmem>>, vector<1x128xf32>
    %29 = vector.broadcast %28 : vector<1x128xf32> to vector<256x128xf32>
    %30 = arith.addf %27, %29 : vector<256x128xf32>
    %cst_23 = arith.constant 0.000000e+00 : f32
    %31 = vector.broadcast %cst_23 : f32 to vector<256x128xf32>
    %32 = arith.maximumf %30, %31 : vector<256x128xf32>
    %33 = arith.truncf %32 : vector<256x128xf32> to vector<256x128xbf16>
    %c0_24 = arith.constant 0 : index
    %c0_25 = arith.constant 0 : index
    %34 = vector.load %arg10[%c0_24, %c0_25] : memref<128x64xbf16, #tpu.memory_space<vmem>>, vector<128x64xbf16>
    %cst_26 = arith.constant dense<0.000000e+00> : vector<256x64xf32>
    %35 = tpu.matmul %33, %34, %cst_26 {dimension_numbers = #tpu.dot_dimension_numbers<[1], [0], [0], [1], [0, 0, 1, 1], [], []>} : vector<256x128xbf16>, vector<128x64xbf16>, vector<256x64xf32> -> vector<256x64xf32>
    %c0_27 = arith.constant 0 : index
    %c0_28 = arith.constant 0 : index
    %36 = vector.load %arg11[%c0_27, %c0_28] : memref<1x64xf32, #tpu.memory_space<vmem>>, vector<1x64xf32>
    %37 = vector.broadcast %36 : vector<1x64xf32> to vector<256x64xf32>
    %38 = arith.addf %35, %37 : vector<256x64xf32>
    %cst_29 = arith.constant 0.000000e+00 : f32
    %39 = vector.broadcast %cst_29 : f32 to vector<256x64xf32>
    %40 = arith.maximumf %38, %39 : vector<256x64xf32>
    %41 = arith.truncf %40 : vector<256x64xf32> to vector<256x64xbf16>
    %c0_30 = arith.constant 0 : index
    %c0_31 = arith.constant 0 : index
    %42 = vector.load %arg12[%c0_30, %c0_31] : memref<64x32xbf16, #tpu.memory_space<vmem>>, vector<64x32xbf16>
    %cst_32 = arith.constant dense<0.000000e+00> : vector<256x32xf32>
    %43 = tpu.matmul %41, %42, %cst_32 {dimension_numbers = #tpu.dot_dimension_numbers<[1], [0], [0], [1], [0, 0, 1, 1], [], []>} : vector<256x64xbf16>, vector<64x32xbf16>, vector<256x32xf32> -> vector<256x32xf32>
    %c0_33 = arith.constant 0 : index
    %c0_34 = arith.constant 0 : index
    %44 = vector.load %arg13[%c0_33, %c0_34] : memref<1x32xf32, #tpu.memory_space<vmem>>, vector<1x32xf32>
    %45 = vector.broadcast %44 : vector<1x32xf32> to vector<256x32xf32>
    %46 = arith.addf %43, %45 : vector<256x32xf32>
    %cst_35 = arith.constant 0.000000e+00 : f32
    %47 = vector.broadcast %cst_35 : f32 to vector<256x32xf32>
    %48 = arith.maximumf %46, %47 : vector<256x32xf32>
    %49 = arith.truncf %48 : vector<256x32xf32> to vector<256x32xbf16>
    %c0_36 = arith.constant 0 : index
    %c0_37 = arith.constant 0 : index
    %50 = vector.load %arg14[%c0_36, %c0_37] : memref<32x4xbf16, #tpu.memory_space<vmem>>, vector<32x4xbf16>
    %cst_38 = arith.constant dense<0.000000e+00> : vector<256x4xf32>
    %51 = tpu.matmul %49, %50, %cst_38 {dimension_numbers = #tpu.dot_dimension_numbers<[1], [0], [0], [1], [0, 0, 1, 1], [], []>} : vector<256x32xbf16>, vector<32x4xbf16>, vector<256x4xf32> -> vector<256x4xf32>
    %c0_39 = arith.constant 0 : index
    %c0_40 = arith.constant 0 : index
    %52 = vector.load %arg15[%c0_39, %c0_40] : memref<1x4xf32, #tpu.memory_space<vmem>>, vector<1x4xf32>
    %53 = vector.broadcast %52 : vector<1x4xf32> to vector<256x4xf32>
    %54 = arith.addf %51, %53 : vector<256x4xf32>
    %c0_41 = arith.constant 0 : index
    %c0_42 = arith.constant 0 : index
    %55 = vector.load %arg16[%c0_41, %c0_42] : memref<256x4xf32, #tpu.memory_space<vmem>>, vector<256x4xf32>
    tpu.vector_store %arg16[%c0_41, %c0_42], %54 {strides = array<i32>} : memref<256x4xf32, #tpu.memory_space<vmem>>, vector<256x4xf32>,
    return
  }
  func.func @transform_0(%arg0: i32) -> (i32, i32) {
    %c0_i32 = arith.constant 0 : i32
    %c0_i32_0 = arith.constant 0 : i32
    return %arg0, %c0_i32 : i32, i32
  }
  func.func @transform_1(%arg0: i32) -> (i32, i32) {
    %c0_i32 = arith.constant 0 : i32
    %c0_i32_0 = arith.constant 0 : i32
    %c0_i32_1 = arith.constant 0 : i32
    return %c0_i32, %c0_i32_0 : i32, i32
  }
  func.func @transform_2(%arg0: i32) -> (i32, i32) {
    %c0_i32 = arith.constant 0 : i32
    %c0_i32_0 = arith.constant 0 : i32
    %c0_i32_1 = arith.constant 0 : i32
    return %c0_i32, %c0_i32_0 : i32, i32
  }
  func.func @transform_3(%arg0: i32) -> (i32, i32) {
    %c0_i32 = arith.constant 0 : i32
    %c0_i32_0 = arith.constant 0 : i32
    %c0_i32_1 = arith.constant 0 : i32
    return %c0_i32, %c0_i32_0 : i32, i32
  }
  func.func @transform_4(%arg0: i32) -> (i32, i32) {
    %c0_i32 = arith.constant 0 : i32
    %c0_i32_0 = arith.constant 0 : i32
    %c0_i32_1 = arith.constant 0 : i32
    return %c0_i32, %c0_i32_0 : i32, i32
  }
  func.func @transform_5(%arg0: i32) -> (i32, i32) {
    %c0_i32 = arith.constant 0 : i32
    %c0_i32_0 = arith.constant 0 : i32
    %c0_i32_1 = arith.constant 0 : i32
    return %c0_i32, %c0_i32_0 : i32, i32
  }
  func.func @transform_6(%arg0: i32) -> (i32, i32) {
    %c0_i32 = arith.constant 0 : i32
    %c0_i32_0 = arith.constant 0 : i32
    %c0_i32_1 = arith.constant 0 : i32
    return %c0_i32, %c0_i32_0 : i32, i32
  }
  func.func @transform_7(%arg0: i32) -> (i32, i32) {
    %c0_i32 = arith.constant 0 : i32
    %c0_i32_0 = arith.constant 0 : i32
    %c0_i32_1 = arith.constant 0 : i32
    return %c0_i32, %c0_i32_0 : i32, i32
  }
  func.func @transform_8(%arg0: i32) -> (i32, i32) {
    %c0_i32 = arith.constant 0 : i32
    %c0_i32_0 = arith.constant 0 : i32
    %c0_i32_1 = arith.constant 0 : i32
    return %c0_i32, %c0_i32_0 : i32, i32
  }
  func.func @transform_9(%arg0: i32) -> (i32, i32) {
    %c0_i32 = arith.constant 0 : i32
    %c0_i32_0 = arith.constant 0 : i32
    %c0_i32_1 = arith.constant 0 : i32
    return %c0_i32, %c0_i32_0 : i32, i32
  }
  func.func @transform_10(%arg0: i32) -> (i32, i32) {
    %c0_i32 = arith.constant 0 : i32
    %c0_i32_0 = arith.constant 0 : i32
    %c0_i32_1 = arith.constant 0 : i32
    return %c0_i32, %c0_i32_0 : i32, i32
  }
  func.func @transform_11(%arg0: i32) -> (i32, i32) {
    %c0_i32 = arith.constant 0 : i32
    %c0_i32_0 = arith.constant 0 : i32
    %c0_i32_1 = arith.constant 0 : i32
    return %c0_i32, %c0_i32_0 : i32, i32
  }
  func.func @transform_12(%arg0: i32) -> (i32, i32) {
    %c0_i32 = arith.constant 0 : i32
    %c0_i32_0 = arith.constant 0 : i32
    %c0_i32_1 = arith.constant 0 : i32
    return %c0_i32, %c0_i32_0 : i32, i32
  }
  func.func @transform_13(%arg0: i32) -> (i32, i32) {
    %c0_i32 = arith.constant 0 : i32
    %c0_i32_0 = arith.constant 0 : i32
    %c0_i32_1 = arith.constant 0 : i32
    return %c0_i32, %c0_i32_0 : i32, i32
  }
  func.func @transform_14(%arg0: i32) -> (i32, i32) {
    %c0_i32 = arith.constant 0 : i32
    %c0_i32_0 = arith.constant 0 : i32
    %c0_i32_1 = arith.constant 0 : i32
    return %c0_i32, %c0_i32_0 : i32, i32
  }
  func.func @transform_15(%arg0: i32) -> (i32, i32) {
    %c0_i32 = arith.constant 0 : i32
    %c0_i32_0 = arith.constant 0 : i32
    return %arg0, %c0_i32 : i32, i32
  }
}

</mosaic_0001>

<llo_original>
// kernel: tpu_custom_call.1
$region0: #{tpu_custom_call.1}
  #allocation0 [shape = 'u32[]', space=smem, size = 0x4, offset = 0x4, fixed_abs, tag = 'smem constant byte address 0x4 - core index']
  #allocation1 [shape = 'u32[144,128]{1,0:T(1,128)}', space=vmem, size = 0x12000, scoped, tag = 'internal scratch']
  %s0 = inlined_call_operand.vmem [shape: f32[512,16], index: 0, kind: input, shape index: {}]
  %s1 = inlined_call_operand.vmem [shape: bf16[16,32], index: 1, kind: input, shape index: {}]
  %s2 = inlined_call_operand.vmem [shape: f32[1,32], index: 2, kind: input, shape index: {}]
  %s3 = inlined_call_operand.vmem [shape: bf16[32,64], index: 3, kind: input, shape index: {}]
  %s4 = inlined_call_operand.vmem [shape: f32[1,64], index: 4, kind: input, shape index: {}]
  %s5 = inlined_call_operand.vmem [shape: bf16[64,128], index: 5, kind: input, shape index: {}]
  %s6 = inlined_call_operand.vmem [shape: f32[1,128], index: 6, kind: input, shape index: {}]
  %s7 = inlined_call_operand.vmem [shape: bf16[128,128], index: 7, kind: input, shape index: {}]
  %s8 = inlined_call_operand.vmem [shape: f32[1,128], index: 8, kind: input, shape index: {}]
  %s9 = inlined_call_operand.vmem [shape: bf16[128,64], index: 9, kind: input, shape index: {}]
  %s10 = inlined_call_operand.vmem [shape: f32[1,64], index: 10, kind: input, shape index: {}]
  %s11 = inlined_call_operand.vmem [shape: bf16[64,32], index: 11, kind: input, shape index: {}]
  %s12 = inlined_call_operand.vmem [shape: f32[1,32], index: 12, kind: input, shape index: {}]
  %s13 = inlined_call_operand.vmem [shape: bf16[32,4], index: 13, kind: input, shape index: {}]
  %s14 = inlined_call_operand.vmem [shape: f32[1,4], index: 14, kind: input, shape index: {}]
  %s15 = inlined_call_operand.vmem [shape: f32[512,4], index: 15, kind: output, shape index: {}]
  %s16 = sld [smem:[#allocation0]]
  $region93: #{tpu_custom_call.1} parent=0
    _
  %s18 = ssub.s32 1, %s16
  %s19 = scalar_select 0, %s18, %s16
  loop: start=0, step=1, limit=4
  $region2: #{tpu_custom_call.1} parent=0 // loop_pre_header
    _
  $region3: #{tpu_custom_call.1} parent=0 // loop_header
    %s21 = sphi 0, %s25
    %p22 = scmp.ge.s32.totalorder %s21, 4
    %s31 = sphi 0, %s33
    %s34 = sphi 0, %s31
    %s35 = sphi 0, %s34
    %s51 = sphi 0, %s35
    %s55 = sphi 0, %s55
    %s57 = sphi 0, %s55
    %s58 = sphi 0, %s57
    %s72 = sphi 0, %s58
    %s76 = sphi 0, %s76
    %s78 = sphi 0, %s76
    %s79 = sphi 0, %s78
    %s93 = sphi 0, %s79
    %s97 = sphi 0, %s97
    %s99 = sphi 0, %s97
    %s100 = sphi 0, %s99
    %s114 = sphi 0, %s100
    %s118 = sphi 0, %s118
    %s120 = sphi 0, %s118
    %s121 = sphi 0, %s120
    %s135 = sphi 0, %s121
    %s139 = sphi 0, %s139
    %s141 = sphi 0, %s139
    %s142 = sphi 0, %s141
    %s156 = sphi 0, %s142
    %s160 = sphi 0, %s160
    %s162 = sphi 0, %s160
    %s163 = sphi 0, %s162
    %s177 = sphi 0, %s163
    %s181 = sphi 0, %s181
    %s183 = sphi 0, %s181
    %s184 = sphi 0, %s183
    %s198 = sphi 0, %s184
    %s202 = sphi 0, %s202
    %s204 = sphi 0, %s202
    %s205 = sphi 0, %s204
    %s219 = sphi 0, %s205
    %s223 = sphi 0, %s223
    %s225 = sphi 0, %s223
    %s226 = sphi 0, %s225
    %s240 = sphi 0, %s226
    %s244 = sphi 0, %s244
    %s246 = sphi 0, %s244
    %s247 = sphi 0, %s246
    %s261 = sphi 0, %s247
    %s265 = sphi 0, %s265
    %s267 = sphi 0, %s265
    %s268 = sphi 0, %s267
    %s282 = sphi 0, %s268
    %s286 = sphi 0, %s286
    %s288 = sphi 0, %s286
    %s289 = sphi 0, %s288
    %s303 = sphi 0, %s289
    %s307 = sphi 0, %s307
    %s309 = sphi 0, %s307
    %s310 = sphi 0, %s309
    %s324 = sphi 0, %s310
    %s328 = sphi 0, %s328
    %s330 = sphi 0, %s328
    %s331 = sphi 0, %s330
    %s345 = sphi 0, %s331
    %s351 = sphi 0, %s353
    %s354 = sphi 0, %s351
    %s355 = sphi 0, %s354
    %s371 = sphi 0, %s355
  $region4: #{tpu_custom_call.1} parent=0 // loop_header_branch
    %24 = sbr.rel (%p22) target = $region8
  $region5: #{tpu_custom_call.1} parent=0 // loop_body
    %s26 = ssub.s32 %s21, 1
    %s27 = ssub.s32 %s21, 2
    %s28 = sadd.s32 %s21, 1
    %s29 = ssub.s32 %s21, %s28
    %p30 = scmp.eq.s32.totalorder %s29, 0
    %s32 = sadd.s32 %s31, 1
    %s33 = scalar_select %p30, %s31, %s32
    %p36 = pneg %p30
    %p37 = scmp.eq.s32.totalorder %s21, 1
    %p38 = por %p36, %p37
    %p39 = scmp.ne.s32.totalorder %s31, %s34
    %p40 = scmp.eq.s32.totalorder %s21, 0
    %p41 = por %p39, %p40
    %p42 = scmp.ne.s32.totalorder %s31, %s34
    %p43 = scmp.eq.s32.totalorder %s26, 1
    %p44 = por %p42, %p43
    %p45 = scmp.ne.s32.totalorder %s34, %s35
    %p46 = scmp.eq.s32.totalorder %s26, 0
    %p47 = por %p45, %p46
    %p48 = scmp.ne.s32.totalorder %s34, %s35
    %p49 = scmp.eq.s32.totalorder %s27, 1
    %p50 = por %p48, %p49
    %p52 = scmp.ne.s32.totalorder %s35, %s51
    %p53 = scmp.eq.s32.totalorder %s27, 0
    %p54 = por %p52, %p53
    %s56 = sadd.s32 %s55, 1
    %p59 = scmp.eq.s32.totalorder %s21, 1
    %p60 = scmp.ne.s32.totalorder %s55, %s57
    %p61 = scmp.eq.s32.totalorder %s21, 0
    %p62 = por %p60, %p61
    %p63 = scmp.ne.s32.totalorder %s55, %s57
    %p64 = scmp.eq.s32.totalorder %s26, 1
    %p65 = por %p63, %p64
    %p66 = scmp.ne.s32.totalorder %s57, %s58
    %p67 = scmp.eq.s32.totalorder %s26, 0
    %p68 = por %p66, %p67
    %p69 = scmp.ne.s32.totalorder %s57, %s58
    %p70 = scmp.eq.s32.totalorder %s27, 1
    %p71 = por %p69, %p70
    %p73 = scmp.ne.s32.totalorder %s58, %s72
    %p74 = scmp.eq.s32.totalorder %s27, 0
    %p75 = por %p73, %p74
    %s77 = sadd.s32 %s76, 1
    %p80 = scmp.eq.s32.totalorder %s21, 1
    %p81 = scmp.ne.s32.totalorder %s76, %s78
    %p82 = scmp.eq.s32.totalorder %s21, 0
    %p83 = por %p81, %p82
    %p84 = scmp.ne.s32.totalorder %s76, %s78
    %p85 = scmp.eq.s32.totalorder %s26, 1
    %p86 = por %p84, %p85
    %p87 = scmp.ne.s32.totalorder %s78, %s79
    %p88 = scmp.eq.s32.totalorder %s26, 0
    %p89 = por %p87, %p88
    %p90 = scmp.ne.s32.totalorder %s78, %s79
    %p91 = scmp.eq.s32.totalorder %s27, 1
    %p92 = por %p90, %p91
    %p94 = scmp.ne.s32.totalorder %s79, %s93
    %p95 = scmp.eq.s32.totalorder %s27, 0
    %p96 = por %p94, %p95
    %s98 = sadd.s32 %s97, 1
    %p101 = scmp.eq.s32.totalorder %s21, 1
    %p102 = scmp.ne.s32.totalorder %s97, %s99
    %p103 = scmp.eq.s32.totalorder %s21, 0
    %p104 = por %p102, %p103
    %p105 = scmp.ne.s32.totalorder %s97, %s99
    %p106 = scmp.eq.s32.totalorder %s26, 1
    %p107 = por %p105, %p106
    %p108 = scmp.ne.s32.totalorder %s99, %s100
    %p109 = scmp.eq.s32.totalorder %s26, 0
    %p110 = por %p108, %p109
    %p111 = scmp.ne.s32.totalorder %s99, %s100
    %p112 = scmp.eq.s32.totalorder %s27, 1
    %p113 = por %p111, %p112
    %p115 = scmp.ne.s32.totalorder %s100, %s114
    %p116 = scmp.eq.s32.totalorder %s27, 0
    %p117 = por %p115, %p116
    %s119 = sadd.s32 %s118, 1
    %p122 = scmp.eq.s32.totalorder %s21, 1
    %p123 = scmp.ne.s32.totalorder %s118, %s120
    %p124 = scmp.eq.s32.totalorder %s21, 0
    %p125 = por %p123, %p124
    %p126 = scmp.ne.s32.totalorder %s118, %s120
    %p127 = scmp.eq.s32.totalorder %s26, 1
    %p128 = por %p126, %p127
    %p129 = scmp.ne.s32.totalorder %s120, %s121
    %p130 = scmp.eq.s32.totalorder %s26, 0
    %p131 = por %p129, %p130
    %p132 = scmp.ne.s32.totalorder %s120, %s121
    %p133 = scmp.eq.s32.totalorder %s27, 1
    %p134 = por %p132, %p133
    %p136 = scmp.ne.s32.totalorder %s121, %s135
    %p137 = scmp.eq.s32.totalorder %s27, 0
    %p138 = por %p136, %p137
    %s140 = sadd.s32 %s139, 1
    %p143 = scmp.eq.s32.totalorder %s21, 1
    %p144 = scmp.ne.s32.totalorder %s139, %s141
    %p145 = scmp.eq.s32.totalorder %s21, 0
    %p146 = por %p144, %p145
    %p147 = scmp.ne.s32.totalorder %s139, %s141
    %p148 = scmp.eq.s32.totalorder %s26, 1
    %p149 = por %p147, %p148
    %p150 = scmp.ne.s32.totalorder %s141, %s142
    %p151 = scmp.eq.s32.totalorder %s26, 0
    %p152 = por %p150, %p151
    %p153 = scmp.ne.s32.totalorder %s141, %s142
    %p154 = scmp.eq.s32.totalorder %s27, 1
    %p155 = por %p153, %p154
    %p157 = scmp.ne.s32.totalorder %s142, %s156
    %p158 = scmp.eq.s32.totalorder %s27, 0
    %p159 = por %p157, %p158
    %s161 = sadd.s32 %s160, 1
    %p164 = scmp.eq.s32.totalorder %s21, 1
    %p165 = scmp.ne.s32.totalorder %s160, %s162
    %p166 = scmp.eq.s32.totalorder %s21, 0
    %p167 = por %p165, %p166
    %p168 = scmp.ne.s32.totalorder %s160, %s162
    %p169 = scmp.eq.s32.totalorder %s26, 1
    %p170 = por %p168, %p169
    %p171 = scmp.ne.s32.totalorder %s162, %s163
    %p172 = scmp.eq.s32.totalorder %s26, 0
    %p173 = por %p171, %p172
    %p174 = scmp.ne.s32.totalorder %s162, %s163
    %p175 = scmp.eq.s32.totalorder %s27, 1
    %p176 = por %p174, %p175
    %p178 = scmp.ne.s32.totalorder %s163, %s177
    %p179 = scmp.eq.s32.totalorder %s27, 0
    %p180 = por %p178, %p179
    %s182 = sadd.s32 %s181, 1
    %p185 = scmp.eq.s32.totalorder %s21, 1
    %p186 = scmp.ne.s32.totalorder %s181, %s183
    %p187 = scmp.eq.s32.totalorder %s21, 0
    %p188 = por %p186, %p187
    %p189 = scmp.ne.s32.totalorder %s181, %s183
    %p190 = scmp.eq.s32.totalorder %s26, 1
    %p191 = por %p189, %p190
    %p192 = scmp.ne.s32.totalorder %s183, %s184
    %p193 = scmp.eq.s32.totalorder %s26, 0
    %p194 = por %p192, %p193
    %p195 = scmp.ne.s32.totalorder %s183, %s184
    %p196 = scmp.eq.s32.totalorder %s27, 1
    %p197 = por %p195, %p196
    %p199 = scmp.ne.s32.totalorder %s184, %s198
    %p200 = scmp.eq.s32.totalorder %s27, 0
    %p201 = por %p199, %p200
    %s203 = sadd.s32 %s202, 1
    %p206 = scmp.eq.s32.totalorder %s21, 1
    %p207 = scmp.ne.s32.totalorder %s202, %s204
    %p208 = scmp.eq.s32.totalorder %s21, 0
    %p209 = por %p207, %p208
    %p210 = scmp.ne.s32.totalorder %s202, %s204
    %p211 = scmp.eq.s32.totalorder %s26, 1
    %p212 = por %p210, %p211
    %p213 = scmp.ne.s32.totalorder %s204, %s205
    %p214 = scmp.eq.s32.totalorder %s26, 0
    %p215 = por %p213, %p214
    %p216 = scmp.ne.s32.totalorder %s204, %s205
    %p217 = scmp.eq.s32.totalorder %s27, 1
    %p218 = por %p216, %p217
    %p220 = scmp.ne.s32.totalorder %s205, %s219
    %p221 = scmp.eq.s32.totalorder %s27, 0
    %p222 = por %p220, %p221
    %s224 = sadd.s32 %s223, 1
    %p227 = scmp.eq.s32.totalorder %s21, 1
    %p228 = scmp.ne.s32.totalorder %s223, %s225
    %p229 = scmp.eq.s32.totalorder %s21, 0
    %p230 = por %p228, %p229
    %p231 = scmp.ne.s32.totalorder %s223, %s225
    %p232 = scmp.eq.s32.totalorder %s26, 1
    %p233 = por %p231, %p232
    %p234 = scmp.ne.s32.totalorder %s225, %s226
    %p235 = scmp.eq.s32.totalorder %s26, 0
    %p236 = por %p234, %p235
    %p237 = scmp.ne.s32.totalorder %s225, %s226
    %p238 = scmp.eq.s32.totalorder %s27, 1
    %p239 = por %p237, %p238
    %p241 = scmp.ne.s32.totalorder %s226, %s240
    %p242 = scmp.eq.s32.totalorder %s27, 0
    %p243 = por %p241, %p242
    %s245 = sadd.s32 %s244, 1
    %p248 = scmp.eq.s32.totalorder %s21, 1
    %p249 = scmp.ne.s32.totalorder %s244, %s246
    %p250 = scmp.eq.s32.totalorder %s21, 0
    %p251 = por %p249, %p250
    %p252 = scmp.ne.s32.totalorder %s244, %s246
    %p253 = scmp.eq.s32.totalorder %s26, 1
    %p254 = por %p252, %p253
    %p255 = scmp.ne.s32.totalorder %s246, %s247
    %p256 = scmp.eq.s32.totalorder %s26, 0
    %p257 = por %p255, %p256
    %p258 = scmp.ne.s32.totalorder %s246, %s247
    %p259 = scmp.eq.s32.totalorder %s27, 1
    %p260 = por %p258, %p259
    %p262 = scmp.ne.s32.totalorder %s247, %s261
    %p263 = scmp.eq.s32.totalorder %s27, 0
    %p264 = por %p262, %p263
    %s266 = sadd.s32 %s265, 1
    %p269 = scmp.eq.s32.totalorder %s21, 1
    %p270 = scmp.ne.s32.totalorder %s265, %s267
    %p271 = scmp.eq.s32.totalorder %s21, 0
    %p272 = por %p270, %p271
    %p273 = scmp.ne.s32.totalorder %s265, %s267
    %p274 = scmp.eq.s32.totalorder %s26, 1
    %p275 = por %p273, %p274
    %p276 = scmp.ne.s32.totalorder %s267, %s268
    %p277 = scmp.eq.s32.totalorder %s26, 0
    %p278 = por %p276, %p277
    %p279 = scmp.ne.s32.totalorder %s267, %s268
    %p280 = scmp.eq.s32.totalorder %s27, 1
    %p281 = por %p279, %p280
    %p283 = scmp.ne.s32.totalorder %s268, %s282
    %p284 = scmp.eq.s32.totalorder %s27, 0
    %p285 = por %p283, %p284
    %s287 = sadd.s32 %s286, 1
    %p290 = scmp.eq.s32.totalorder %s21, 1
    %p291 = scmp.ne.s32.totalorder %s286, %s288
    %p292 = scmp.eq.s32.totalorder %s21, 0
    %p293 = por %p291, %p292
    %p294 = scmp.ne.s32.totalorder %s286, %s288
    %p295 = scmp.eq.s32.totalorder %s26, 1
    %p296 = por %p294, %p295
    %p297 = scmp.ne.s32.totalorder %s288, %s289
    %p298 = scmp.eq.s32.totalorder %s26, 0
    %p299 = por %p297, %p298
    %p300 = scmp.ne.s32.totalorder %s288, %s289
    %p301 = scmp.eq.s32.totalorder %s27, 1
    %p302 = por %p300, %p301
    %p304 = scmp.ne.s32.totalorder %s289, %s303
    %p305 = scmp.eq.s32.totalorder %s27, 0
    %p306 = por %p304, %p305
    %s308 = sadd.s32 %s307, 1
    %p311 = scmp.eq.s32.totalorder %s21, 1
    %p312 = scmp.ne.s32.totalorder %s307, %s309
    %p313 = scmp.eq.s32.totalorder %s21, 0
    %p314 = por %p312, %p313
    %p315 = scmp.ne.s32.totalorder %s307, %s309
    %p316 = scmp.eq.s32.totalorder %s26, 1
    %p317 = por %p315, %p316
    %p318 = scmp.ne.s32.totalorder %s309, %s310
    %p319 = scmp.eq.s32.totalorder %s26, 0
    %p320 = por %p318, %p319
    %p321 = scmp.ne.s32.totalorder %s309, %s310
    %p322 = scmp.eq.s32.totalorder %s27, 1
    %p323 = por %p321, %p322
    %p325 = scmp.ne.s32.totalorder %s310, %s324
    %p326 = scmp.eq.s32.totalorder %s27, 0
    %p327 = por %p325, %p326
    %s329 = sadd.s32 %s328, 1
    %p332 = scmp.eq.s32.totalorder %s21, 1
    %p333 = scmp.ne.s32.totalorder %s328, %s330
    %p334 = scmp.eq.s32.totalorder %s21, 0
    %p335 = por %p333, %p334
    %p336 = scmp.ne.s32.totalorder %s328, %s330
    %p337 = scmp.eq.s32.totalorder %s26, 1
    %p338 = por %p336, %p337
    %p339 = scmp.ne.s32.totalorder %s330, %s331
    %p340 = scmp.eq.s32.totalorder %s26, 0
    %p341 = por %p339, %p340
    %p342 = scmp.ne.s32.totalorder %s330, %s331
    %p343 = scmp.eq.s32.totalorder %s27, 1
    %p344 = por %p342, %p343
    %p346 = scmp.ne.s32.totalorder %s331, %s345
    %p347 = scmp.eq.s32.totalorder %s27, 0
    %p348 = por %p346, %p347
    %s349 = ssub.s32 %s21, %s28
    %p350 = scmp.eq.s32.totalorder %s349, 0
    %s352 = sadd.s32 %s351, 1
    %s353 = scalar_select %p350, %s351, %s352
    %p356 = pneg %p350
    %p357 = scmp.eq.s32.totalorder %s21, 1
    %p358 = por %p356, %p357
    %p359 = scmp.ne.s32.totalorder %s351, %s354
    %p360 = scmp.eq.s32.totalorder %s21, 0
    %p361 = por %p359, %p360
    %p362 = scmp.ne.s32.totalorder %s351, %s354
    %p363 = scmp.eq.s32.totalorder %s26, 1
    %p364 = por %p362, %p363
    %p365 = scmp.ne.s32.totalorder %s354, %s355
    %p366 = scmp.eq.s32.totalorder %s26, 0
    %p367 = por %p365, %p366
    %p368 = scmp.ne.s32.totalorder %s354, %s355
    %p369 = scmp.eq.s32.totalorder %s27, 1
    %p370 = por %p368, %p369
    %p372 = scmp.ne.s32.totalorder %s355, %s371
    %p373 = scmp.eq.s32.totalorder %s27, 0
    %p374 = por %p372, %p373
    %p375 = scmp.le.s32.totalorder 1, %s21
    %p376 = scmp.lt.s32.totalorder %s21, 3
    %p377 = pnand %p375, %p376
    %p378 = pneg %p377
    // Predicated region
    $region9: #{tpu_custom_call.1} parent=5 // pred_check
      _
    $region10: #{tpu_custom_call.1} parent=5 // pred_check_branch
      %380 = sbr.rel (%p377) target = $region12
    $region11: #{tpu_custom_call.1} parent=5 // pred_region
      %s381 = ssub.s32 %s21, 1
      // Predicated region
      $region13: #{tpu_custom_call.1} parent=11 // pred_check
        %p382 = pneg %p68
      $region14: #{tpu_custom_call.1} parent=11 // pred_check_branch
        %384 = sbr.rel (%p382) target = $region16
      $region15: #{tpu_custom_call.1} parent=11 // pred_region
        _
      $region16: #{tpu_custom_call.1} parent=11 // pred_fallthru
        _
      // Predicated region
      $region17: #{tpu_custom_call.1} parent=11 // pred_check
        %p385 = pneg %p89
      $region18: #{tpu_custom_call.1} parent=11 // pred_check_branch
        %387 = sbr.rel (%p385) target = $region20
      $region19: #{tpu_custom_call.1} parent=11 // pred_region
        _
      $region20: #{tpu_custom_call.1} parent=11 // pred_fallthru
        _
      // Predicated region
      $region21: #{tpu_custom_call.1} parent=11 // pred_check
        %p388 = pneg %p110
      $region22: #{tpu_custom_call.1} parent=11 // pred_check_branch
        %390 = sbr.rel (%p388) target = $region24
      $region23: #{tpu_custom_call.1} parent=11 // pred_region
        _
      $region24: #{tpu_custom_call.1} parent=11 // pred_fallthru
        _
      // Predicated region
      $region25: #{tpu_custom_call.1} parent=11 // pred_check
        %p391 = pneg %p131
      $region26: #{tpu_custom_call.1} parent=11 // pred_check_branch
        %393 = sbr.rel (%p391) target = $region28
      $region27: #{tpu_custom_call.1} parent=11 // pred_region
        _
      $region28: #{tpu_custom_call.1} parent=11 // pred_fallthru
        _
      // Predicated region
      $region29: #{tpu_custom_call.1} parent=11 // pred_check
        %p394 = pneg %p152
      $region30: #{tpu_custom_call.1} parent=11 // pred_check_branch
        %396 = sbr.rel (%p394) target = $region32
      $region31: #{tpu_custom_call.1} parent=11 // pred_region
        _
      $region32: #{tpu_custom_call.1} parent=11 // pred_fallthru
        _
      // Predicated region
      $region33: #{tpu_custom_call.1} parent=11 // pred_check
        %p397 = pneg %p173
      $region34: #{tpu_custom_call.1} parent=11 // pred_check_branch
        %399 = sbr.rel (%p397) target = $region36
      $region35: #{tpu_custom_call.1} parent=11 // pred_region
        _
      $region36: #{tpu_custom_call.1} parent=11 // pred_fallthru
        _
      // Predicated region
      $region37: #{tpu_custom_call.1} parent=11 // pred_check
        %p400 = pneg %p194
      $region38: #{tpu_custom_call.1} parent=11 // pred_check_branch
        %402 = sbr.rel (%p400) target = $region40
      $region39: #{tpu_custom_call.1} parent=11 // pred_region
        _
      $region40: #{tpu_custom_call.1} parent=11 // pred_fallthru
        _
      // Predicated region
      $region41: #{tpu_custom_call.1} parent=11 // pred_check
        %p403 = pneg %p215
      $region42: #{tpu_custom_call.1} parent=11 // pred_check_branch
        %405 = sbr.rel (%p403) target = $region44
      $region43: #{tpu_custom_call.1} parent=11 // pred_region
        _
      $region44: #{tpu_custom_call.1} parent=11 // pred_fallthru
        _
      // Predicated region
      $region45: #{tpu_custom_call.1} parent=11 // pred_check
        %p406 = pneg %p236
      $region46: #{tpu_custom_call.1} parent=11 // pred_check_branch
        %408 = sbr.rel (%p406) target = $region48
      $region47: #{tpu_custom_call.1} parent=11 // pred_region
        _
      $region48: #{tpu_custom_call.1} parent=11 // pred_fallthru
        _
      // Predicated region
      $region49: #{tpu_custom_call.1} parent=11 // pred_check
        %p409 = pneg %p257
      $region50: #{tpu_custom_call.1} parent=11 // pred_check_branch
        %411 = sbr.rel (%p409) target = $region52
      $region51: #{tpu_custom_call.1} parent=11 // pred_region
        _
      $region52: #{tpu_custom_call.1} parent=11 // pred_fallthru
        _
      // Predicated region
      $region53: #{tpu_custom_call.1} parent=11 // pred_check
        %p412 = pneg %p278
      $region54: #{tpu_custom_call.1} parent=11 // pred_check_branch
        %414 = sbr.rel (%p412) target = $region56
      $region55: #{tpu_custom_call.1} parent=11 // pred_region
        _
      $region56: #{tpu_custom_call.1} parent=11 // pred_fallthru
        _
      // Predicated region
      $region57: #{tpu_custom_call.1} parent=11 // pred_check
        %p415 = pneg %p299
      $region58: #{tpu_custom_call.1} parent=11 // pred_check_branch
        %417 = sbr.rel (%p415) target = $region60
      $region59: #{tpu_custom_call.1} parent=11 // pred_region
        _
      $region60: #{tpu_custom_call.1} parent=11 // pred_fallthru
        _
      // Predicated region
      $region61: #{tpu_custom_call.1} parent=11 // pred_check
        %p418 = pneg %p320
      $region62: #{tpu_custom_call.1} parent=11 // pred_check_branch
        %420 = sbr.rel (%p418) target = $region64
      $region63: #{tpu_custom_call.1} parent=11 // pred_region
        _
      $region64: #{tpu_custom_call.1} parent=11 // pred_fallthru
        _
      // Predicated region
      $region65: #{tpu_custom_call.1} parent=11 // pred_check
        %p421 = pneg %p341
      $region66: #{tpu_custom_call.1} parent=11 // pred_check_branch
        %423 = sbr.rel (%p421) target = $region68
      $region67: #{tpu_custom_call.1} parent=11 // pred_region
        _
      $region68: #{tpu_custom_call.1} parent=11 // pred_fallthru
        _
    $region12: #{tpu_custom_call.1} parent=5 // pred_fallthru
      _
    %p424 = scmp.lt.s32.totalorder %s21, 2
    // Predicated region
    $region69: #{tpu_custom_call.1} parent=5 // pred_check
      %p425 = pneg %p424
    $region70: #{tpu_custom_call.1} parent=5 // pred_check_branch
      %427 = sbr.rel (%p425) target = $region72
    $region71: #{tpu_custom_call.1} parent=5 // pred_region
      // Predicated region
      $region73: #{tpu_custom_call.1} parent=71 // pred_check
        %p428 = pneg %p41
      $region74: #{tpu_custom_call.1} parent=71 // pred_check_branch
        %430 = sbr.rel (%p428) target = $region76
      $region75: #{tpu_custom_call.1} parent=71 // pred_region
        %s431 = smul.u32 32, %s21
        %p432 = scmp.lt.s32.totalorder %s431, 63
        %s433 = scalar_select %p432, %s431, 63
        %s434 = smul.addr %s433, 8
        %s435 = scalar_lea.vmem %s0, %s434
        %s436 = smul.u32 32, %s21
      $region76: #{tpu_custom_call.1} parent=71 // pred_fallthru
        _
    $region72: #{tpu_custom_call.1} parent=5 // pred_fallthru
      _
    %p437 = scmp.le.s32.totalorder 1, %s21
    %p438 = scmp.lt.s32.totalorder %s21, 3
    %p439 = pnand %p437, %p438
    %p440 = pneg %p439
    // Predicated region
    $region77: #{tpu_custom_call.1} parent=5 // pred_check
      _
    $region78: #{tpu_custom_call.1} parent=5 // pred_check_branch
      %442 = sbr.rel (%p439) target = $region80
    $region79: #{tpu_custom_call.1} parent=5 // pred_region
      %s443 = ssub.s32 %s21, 1
      %s444 = smul.u32 32, %s26
      %p445 = scmp.lt.s32.totalorder %s444, 63
      %s446 = scalar_select %p445, %s444, 63
      %s447 = smul.addr %s446, 8
      %s448 = scalar_lea.vmem %s0, %s447
      %p449 = pneg %p47
      %p450 = pneg %p44
      %p451 = pneg %p68
      %p452 = pneg %p65
      %p453 = pneg %p89
      %p454 = pneg %p86
      %p455 = pneg %p110
      %p456 = pneg %p107
      %p457 = pneg %p131
      %p458 = pneg %p128
      %p459 = pneg %p152
      %p460 = pneg %p149
      %p461 = pneg %p173
      %p462 = pneg %p170
      %p463 = pneg %p194
      %p464 = pneg %p191
      %p465 = pneg %p215
      %p466 = pneg %p212
      %p467 = pneg %p236
      %p468 = pneg %p233
      %p469 = pneg %p257
      %p470 = pneg %p254
      %p471 = pneg %p278
      %p472 = pneg %p275
      %p473 = pneg %p299
      %p474 = pneg %p296
      %p475 = pneg %p320
      %p476 = pneg %p317
      %p477 = pneg %p341
      %p478 = pneg %p338
      %p479 = pneg %p367
      %p480 = pneg %p364
      %s481 = smul.u32 32, %s26
      %p482 = scmp.lt.s32.totalorder %s481, 63
      %s483 = scalar_select %p482, %s481, 63
      %s484 = smul.addr %s483, 8
      %s485 = scalar_lea.vmem %s15, %s484
      %s486 = smul.u32 32, %s26
      %p487 = scmp.lt.s32.totalorder %s486, 63
      %s488 = scalar_select %p487, %s486, 63
      %s489 = smul.addr %s488, 8
      %s490 = scalar_lea.vmem %s0, %s489
      %s491 = smul.u32 32, %s26
      %s492 = smul.u32 32, %s26
      %p493 = scmp.lt.s32.totalorder %s492, 63
      %s494 = scalar_select %p493, %s492, 63
      %s495 = smul.addr %s494, 8
      %s496 = scalar_lea.vmem %s15, %s495
      %s497 = smul.u32 32, %s26
      %v499 = vld [vmem:[%s490] sm:$0xff]
      %v500 = vld [vmem:[%s490 + $0x8] sm:$0xff]
      %v501 = vld [vmem:[%s490 + $0x10] sm:$0xff]
      %v502 = vld [vmem:[%s490 + $0x18] sm:$0xff]
      %v503 = vld [vmem:[%s490 + $0x20] sm:$0xff]
      %v504 = vld [vmem:[%s490 + $0x28] sm:$0xff]
      %v505 = vld [vmem:[%s490 + $0x30] sm:$0xff]
      %v506 = vld [vmem:[%s490 + $0x38] sm:$0xff]
      %v507 = vld [vmem:[%s490 + $0x40] sm:$0xff]
      %v508 = vld [vmem:[%s490 + $0x48] sm:$0xff]
      %v509 = vld [vmem:[%s490 + $0x50] sm:$0xff]
      %v510 = vld [vmem:[%s490 + $0x58] sm:$0xff]
      %v511 = vld [vmem:[%s490 + $0x60] sm:$0xff]
      %v512 = vld [vmem:[%s490 + $0x68] sm:$0xff]
      %v513 = vld [vmem:[%s490 + $0x70] sm:$0xff]
      %v514 = vld [vmem:[%s490 + $0x78] sm:$0xff]
      %v515 = vld [vmem:[%s490 + $0x80] sm:$0xff]
      %v516 = vld [vmem:[%s490 + $0x88] sm:$0xff]
      %v517 = vld [vmem:[%s490 + $0x90] sm:$0xff]
      %v518 = vld [vmem:[%s490 + $0x98] sm:$0xff]
      %v519 = vld [vmem:[%s490 + $0xa0] sm:$0xff]
      %v520 = vld [vmem:[%s490 + $0xa8] sm:$0xff]
      %v521 = vld [vmem:[%s490 + $0xb0] sm:$0xff]
      %v522 = vld [vmem:[%s490 + $0xb8] sm:$0xff]
      %v523 = vld [vmem:[%s490 + $0xc0] sm:$0xff]
      %v524 = vld [vmem:[%s490 + $0xc8] sm:$0xff]
      %v525 = vld [vmem:[%s490 + $0xd0] sm:$0xff]
      %v526 = vld [vmem:[%s490 + $0xd8] sm:$0xff]
      %v527 = vld [vmem:[%s490 + $0xe0] sm:$0xff]
      %v528 = vld [vmem:[%s490 + $0xe8] sm:$0xff]
      %v529 = vld [vmem:[%s490 + $0xf0] sm:$0xff]
      %v530 = vld [vmem:[%s490 + $0xf8] sm:$0xff]
      %v531 = vpack.c.bf16 %v500, %v499
      %v532 = vpack.c.bf16 %v502, %v501
      %v533 = vpack.c.bf16 %v504, %v503
      %v534 = vpack.c.bf16 %v506, %v505
      %v535 = vpack.c.bf16 %v508, %v507
      %v536 = vpack.c.bf16 %v510, %v509
      %v537 = vpack.c.bf16 %v512, %v511
      %v538 = vpack.c.bf16 %v514, %v513
      %v539 = vpack.c.bf16 %v516, %v515
      %v540 = vpack.c.bf16 %v518, %v517
      %v541 = vpack.c.bf16 %v520, %v519
      %v542 = vpack.c.bf16 %v522, %v521
      %v543 = vpack.c.bf16 %v524, %v523
      %v544 = vpack.c.bf16 %v526, %v525
      %v545 = vpack.c.bf16 %v528, %v527
      %v546 = vpack.c.bf16 %v530, %v529
      %v547 = vld [vmem:[%s1] sm:$0xf]
      %v548 = vld [vmem:[%s1 + $0x4] sm:$0xf]
      %v549 = vld [vmem:[%s2] sm:$0x1]
      %v551 = vlaneseq
      %v552 = vshrl.u32 %v551, 7
      %v553 = vsub.s32 0, %v552
      %v554 = vrot.slane %v549, %v553
      %v558 = vunpack.c.l.b16 %v547
      %v559 = vunpack.c.l.b16 %v548
      %v560 = vpack.c.b16 %v559, %v558
      %vm562 = vcmask 130048
      %v564 = vsel %vm562, %v531, 0
      %v567 = vsel %vm562, %v532, 0
      %v570 = vsel %vm562, %v533, 0
      %v573 = vsel %vm562, %v534, 0
      %v576 = vsel %vm562, %v535, 0
      %v579 = vsel %vm562, %v536, 0
      %v582 = vsel %vm562, %v537, 0
      %v585 = vsel %vm562, %v538, 0
      %v588 = vsel %vm562, %v539, 0
      %v591 = vsel %vm562, %v540, 0
      %v594 = vsel %vm562, %v541, 0
      %v597 = vsel %vm562, %v542, 0
      %v600 = vsel %vm562, %v543, 0
      %v603 = vsel %vm562, %v544, 0
      %v606 = vsel %vm562, %v545, 0
      %v609 = vsel %vm562, %v546, 0
      %611 = vmatprep.subr.bf16.mxu0 0
      %612 = vmatpush1.bf16.msra.mxu0 %v560
      %613 = vmatprep.subr.bf16.mxu0 0
      %614 = vmatpush1.bf16.msra.mxu0 0
      %615 = vmatprep.subr.bf16.mxu0 0
      %616 = vmatpush1.bf16.msra.mxu0 0
      %617 = vmatprep.subr.bf16.mxu0 0
      %618 = vmatpush1.bf16.msra.mxu0 0
      %619 = vmatprep.subr.bf16.mxu0 0
      %620 = vmatpush1.bf16.msra.mxu0 0
      %621 = vmatprep.subr.bf16.mxu0 0
      %622 = vmatpush1.bf16.msra.mxu0 0
      %623 = vmatprep.subr.bf16.mxu0 0
      %624 = vmatpush1.bf16.msra.mxu0 0
      %625 = vmatprep.subr.bf16.mxu0 0
      %626 = vmatpush1.bf16.msra.mxu0 0
      %627 = vmatprep.subr.bf16.mxu0 0
      %628 = vmatpush1.bf16.msra.mxu0 0
      %629 = vmatprep.subr.bf16.mxu0 0
      %630 = vmatpush1.bf16.msra.mxu0 0
      %631 = vmatprep.subr.bf16.mxu0 0
      %632 = vmatpush1.bf16.msra.mxu0 0
      %633 = vmatprep.subr.bf16.mxu0 0
      %634 = vmatpush1.bf16.msra.mxu0 0
      %635 = vmatprep.subr.bf16.mxu0 0
      %636 = vmatpush1.bf16.msra.mxu0 0
      %637 = vmatprep.subr.bf16.mxu0 0
      %638 = vmatpush1.bf16.msra.mxu0 0
      %639 = vmatprep.subr.bf16.mxu0 0
      %640 = vmatpush1.bf16.msra.mxu0 0
      %641 = vmatprep.subr.bf16.mxu0 0
      %642 = vmatpush1.bf16.msra.mxu0 0
      %643 = vmatprep.mubr.bf16.mxu0 0
      %644 = vmatmul.mubr.bf16.gmra.mrb[0].mxu0 %v564
      %v645 = vpop.f32.mrb[0].mxu0
      %v646 = vadd.f32 %v554, %v645
      %v647 = vpop.f32.mrb[0].mxu0
      %v648 = vpop.f32.mrb[0].mxu0
      %v649 = vadd.f32 %v554, %v648
      %v650 = vpop.f32.mrb[0].mxu0
      %651 = vmatprep.mubr.bf16.mxu0 0
      %652 = vmatmul.mubr.bf16.gmra.mrb[0].mxu0 %v567
      %v653 = vpop.f32.mrb[0].mxu0
      %v654 = vadd.f32 %v554, %v653
      %v655 = vpop.f32.mrb[0].mxu0
      %v656 = vpop.f32.mrb[0].mxu0
      %v657 = vadd.f32 %v554, %v656
      %v658 = vpop.f32.mrb[0].mxu0
      %659 = vmatprep.mubr.bf16.mxu0 0
      %660 = vmatmul.mubr.bf16.gmra.mrb[0].mxu0 %v570
      %v661 = vpop.f32.mrb[0].mxu0
      %v662 = vadd.f32 %v554, %v661
      %v663 = vpop.f32.mrb[0].mxu0
      %v664 = vpop.f32.mrb[0].mxu0
      %v665 = vadd.f32 %v554, %v664
      %v666 = vpop.f32.mrb[0].mxu0
      %667 = vmatprep.mubr.bf16.mxu0 0
      %668 = vmatmul.mubr.bf16.gmra.mrb[0].mxu0 %v573
      %v669 = vpop.f32.mrb[0].mxu0
      %v670 = vadd.f32 %v554, %v669
      %v671 = vpop.f32.mrb[0].mxu0
      %v672 = vpop.f32.mrb[0].mxu0
      %v673 = vadd.f32 %v554, %v672
      %v674 = vpop.f32.mrb[0].mxu0
      %675 = vmatprep.mubr.bf16.mxu0 0
      %676 = vmatmul.mubr.bf16.gmra.mrb[0].mxu0 %v576
      %v677 = vpop.f32.mrb[0].mxu0
      %v678 = vadd.f32 %v554, %v677
      %v679 = vpop.f32.mrb[0].mxu0
      %v680 = vpop.f32.mrb[0].mxu0
      %v681 = vadd.f32 %v554, %v680
      %v682 = vpop.f32.mrb[0].mxu0
      %683 = vmatprep.mubr.bf16.mxu0 0
      %684 = vmatmul.mubr.bf16.gmra.mrb[0].mxu0 %v579
      %v685 = vpop.f32.mrb[0].mxu0
      %v686 = vadd.f32 %v554, %v685
      %v687 = vpop.f32.mrb[0].mxu0
      %v688 = vpop.f32.mrb[0].mxu0
      %v689 = vadd.f32 %v554, %v688
      %v690 = vpop.f32.mrb[0].mxu0
      %691 = vmatprep.mubr.bf16.mxu0 0
      %692 = vmatmul.mubr.bf16.gmra.mrb[0].mxu0 %v582
      %v693 = vpop.f32.mrb[0].mxu0
      %v694 = vadd.f32 %v554, %v693
      %v695 = vpop.f32.mrb[0].mxu0
      %v696 = vpop.f32.mrb[0].mxu0
      %v697 = vadd.f32 %v554, %v696
      %v698 = vpop.f32.mrb[0].mxu0
      %699 = vmatprep.mubr.bf16.mxu0 0
      %700 = vmatmul.mubr.bf16.gmra.mrb[0].mxu0 %v585
      %v701 = vpop.f32.mrb[0].mxu0
      %v702 = vadd.f32 %v554, %v701
      %v703 = vpop.f32.mrb[0].mxu0
      %v704 = vpop.f32.mrb[0].mxu0
      %v705 = vadd.f32 %v554, %v704
      %v706 = vpop.f32.mrb[0].mxu0
      %707 = vmatprep.mubr.bf16.mxu0 0
      %708 = vmatmul.mubr.bf16.gmra.mrb[0].mxu0 %v588
      %v709 = vpop.f32.mrb[0].mxu0
      %v710 = vadd.f32 %v554, %v709
      %v711 = vpop.f32.mrb[0].mxu0
      %v712 = vpop.f32.mrb[0].mxu0
      %v713 = vadd.f32 %v554, %v712
      %v714 = vpop.f32.mrb[0].mxu0
      %715 = vmatprep.mubr.bf16.mxu0 0
      %716 = vmatmul.mubr.bf16.gmra.mrb[0].mxu0 %v591
      %v717 = vpop.f32.mrb[0].mxu0
      %v718 = vadd.f32 %v554, %v717
      %v719 = vpop.f32.mrb[0].mxu0
      %v720 = vpop.f32.mrb[0].mxu0
      %v721 = vadd.f32 %v554, %v720
      %v722 = vpop.f32.mrb[0].mxu0
      %723 = vmatprep.mubr.bf16.mxu0 0
      %724 = vmatmul.mubr.bf16.gmra.mrb[0].mxu0 %v594
      %v725 = vpop.f32.mrb[0].mxu0
      %v726 = vadd.f32 %v554, %v725
      %v727 = vpop.f32.mrb[0].mxu0
      %v728 = vpop.f32.mrb[0].mxu0
      %v729 = vadd.f32 %v554, %v728
      %v730 = vpop.f32.mrb[0].mxu0
      %731 = vmatprep.mubr.bf16.mxu0 0
      %732 = vmatmul.mubr.bf16.gmra.mrb[0].mxu0 %v597
      %v733 = vpop.f32.mrb[0].mxu0
      %v734 = vadd.f32 %v554, %v733
      %v735 = vpop.f32.mrb[0].mxu0
      %v736 = vpop.f32.mrb[0].mxu0
      %v737 = vadd.f32 %v554, %v736
      %v738 = vpop.f32.mrb[0].mxu0
      %739 = vmatprep.mubr.bf16.mxu0 0
      %740 = vmatmul.mubr.bf16.gmra.mrb[0].mxu0 %v600
      %v741 = vpop.f32.mrb[0].mxu0
      %v742 = vadd.f32 %v554, %v741
      %v743 = vpop.f32.mrb[0].mxu0
      %v744 = vpop.f32.mrb[0].mxu0
      %v745 = vadd.f32 %v554, %v744
      %v746 = vpop.f32.mrb[0].mxu0
      %747 = vmatprep.mubr.bf16.mxu0 0
      %748 = vmatmul.mubr.bf16.gmra.mrb[0].mxu0 %v603
      %v749 = vpop.f32.mrb[0].mxu0
      %v750 = vadd.f32 %v554, %v749
      %v751 = vpop.f32.mrb[0].mxu0
      %v752 = vpop.f32.mrb[0].mxu0
      %v753 = vadd.f32 %v554, %v752
      %v754 = vpop.f32.mrb[0].mxu0
      %755 = vmatprep.mubr.bf16.mxu0 0
      %756 = vmatmul.mubr.bf16.gmra.mrb[0].mxu0 %v606
      %v757 = vpop.f32.mrb[0].mxu0
      %v758 = vadd.f32 %v554, %v757
      %v759 = vpop.f32.mrb[0].mxu0
      %v760 = vpop.f32.mrb[0].mxu0
      %v761 = vadd.f32 %v554, %v760
      %v762 = vpop.f32.mrb[0].mxu0
      %763 = vmatprep.mubr.bf16.mxu0 0
      %764 = vmatmul.mubr.bf16.gmra.mrb[0].mxu0 %v609
      %v765 = vpop.f32.mrb[0].mxu0
      %v766 = vadd.f32 %v554, %v765
      %v767 = vpop.f32.mrb[0].mxu0
      %v768 = vpop.f32.mrb[0].mxu0
      %v769 = vadd.f32 %v554, %v768
      %v770 = vpop.f32.mrb[0].mxu0
      %771 = vdwg.mxu0
      %v772 = vmax.f32 %v646, 0.0
      %v773 = vmax.f32 %v649, 0.0
      %v774 = vmax.f32 %v654, 0.0
      %v775 = vmax.f32 %v657, 0.0
      %v776 = vmax.f32 %v662, 0.0
      %v777 = vmax.f32 %v665, 0.0
      %v778 = vmax.f32 %v670, 0.0
      %v779 = vmax.f32 %v673, 0.0
      %v780 = vmax.f32 %v678, 0.0
      %v781 = vmax.f32 %v681, 0.0
      %v782 = vmax.f32 %v686, 0.0
      %v783 = vmax.f32 %v689, 0.0
      %v784 = vmax.f32 %v694, 0.0
      %v785 = vmax.f32 %v697, 0.0
      %v786 = vmax.f32 %v702, 0.0
      %v787 = vmax.f32 %v705, 0.0
      %v788 = vmax.f32 %v710, 0.0
      %v789 = vmax.f32 %v713, 0.0
      %v790 = vmax.f32 %v718, 0.0
      %v791 = vmax.f32 %v721, 0.0
      %v792 = vmax.f32 %v726, 0.0
      %v793 = vmax.f32 %v729, 0.0
      %v794 = vmax.f32 %v734, 0.0
      %v795 = vmax.f32 %v737, 0.0
      %v796 = vmax.f32 %v742, 0.0
      %v797 = vmax.f32 %v745, 0.0
      %v798 = vmax.f32 %v750, 0.0
      %v799 = vmax.f32 %v753, 0.0
      %v800 = vmax.f32 %v758, 0.0
      %v801 = vmax.f32 %v761, 0.0
      %v802 = vmax.f32 %v766, 0.0
      %v803 = vmax.f32 %v769, 0.0
      %v804 = vpack.c.bf16 %v773, %v772
      %v805 = vpack.c.bf16 %v775, %v774
      %v806 = vpack.c.bf16 %v777, %v776
      %v807 = vpack.c.bf16 %v779, %v778
      %v808 = vpack.c.bf16 %v781, %v780
      %v809 = vpack.c.bf16 %v783, %v782
      %v810 = vpack.c.bf16 %v785, %v784
      %v811 = vpack.c.bf16 %v787, %v786
      %v812 = vpack.c.bf16 %v789, %v788
      %v813 = vpack.c.bf16 %v791, %v790
      %v814 = vpack.c.bf16 %v793, %v792
      %v815 = vpack.c.bf16 %v795, %v794
      %v816 = vpack.c.bf16 %v797, %v796
      %v817 = vpack.c.bf16 %v799, %v798
      %v818 = vpack.c.bf16 %v801, %v800
      %v819 = vpack.c.bf16 %v803, %v802
      %v820 = vld [vmem:[%s3] sm:$0xf]
      %v821 = vld [vmem:[%s3 + $0x4] sm:$0xf]
      %v822 = vld [vmem:[%s3 + $0x8] sm:$0xf]
      %v823 = vld [vmem:[%s3 + $0xc] sm:$0xf]
      %v824 = vld [vmem:[%s4] sm:$0x1]
      %v826 = vlaneseq
      %v827 = vshrl.u32 %v826, 7
      %v828 = vsub.s32 0, %v827
      %v829 = vrot.slane %v824, %v828
      %v835 = vunpack.c.l.b16 %v820
      %v836 = vunpack.c.l.b16 %v821
      %v837 = vunpack.c.l.b16 %v822
      %v838 = vunpack.c.l.b16 %v823
      %v839 = vpack.c.b16 %v836, %v835
      %v840 = vpack.c.b16 %v838, %v837
      %vm843 = vcmask 261120
      %v845 = vsel %vm843, %v804, 0
      %v848 = vsel %vm843, %v805, 0
      %v851 = vsel %vm843, %v806, 0
      %v854 = vsel %vm843, %v807, 0
      %v857 = vsel %vm843, %v808, 0
      %v860 = vsel %vm843, %v809, 0
      %v863 = vsel %vm843, %v810, 0
      %v866 = vsel %vm843, %v811, 0
      %v869 = vsel %vm843, %v812, 0
      %v872 = vsel %vm843, %v813, 0
      %v875 = vsel %vm843, %v814, 0
      %v878 = vsel %vm843, %v815, 0
      %v881 = vsel %vm843, %v816, 0
      %v884 = vsel %vm843, %v817, 0
      %v887 = vsel %vm843, %v818, 0
      %v890 = vsel %vm843, %v819, 0
      %892 = vmatprep.subr.bf16.mxu0 0
      %893 = vmatpush1.bf16.msra.mxu0 %v839
      %894 = vmatprep.subr.bf16.mxu0 0
      %895 = vmatpush1.bf16.msra.mxu0 %v840
      %896 = vmatprep.subr.bf16.mxu0 0
      %897 = vmatpush1.bf16.msra.mxu0 0
      %898 = vmatprep.subr.bf16.mxu0 0
      %899 = vmatpush1.bf16.msra.mxu0 0
      %900 = vmatprep.subr.bf16.mxu0 0
      %901 = vmatpush1.bf16.msra.mxu0 0
      %902 = vmatprep.subr.bf16.mxu0 0
      %903 = vmatpush1.bf16.msra.mxu0 0
      %904 = vmatprep.subr.bf16.mxu0 0
      %905 = vmatpush1.bf16.msra.mxu0 0
      %906 = vmatprep.subr.bf16.mxu0 0
      %907 = vmatpush1.bf16.msra.mxu0 0
      %908 = vmatprep.subr.bf16.mxu0 0
      %909 = vmatpush1.bf16.msra.mxu0 0
      %910 = vmatprep.subr.bf16.mxu0 0
      %911 = vmatpush1.bf16.msra.mxu0 0
      %912 = vmatprep.subr.bf16.mxu0 0
      %913 = vmatpush1.bf16.msra.mxu0 0
      %914 = vmatprep.subr.bf16.mxu0 0
      %915 = vmatpush1.bf16.msra.mxu0 0
      %916 = vmatprep.subr.bf16.mxu0 0
      %917 = vmatpush1.bf16.msra.mxu0 0
      %918 = vmatprep.subr.bf16.mxu0 0
      %919 = vmatpush1.bf16.msra.mxu0 0
      %920 = vmatprep.subr.bf16.mxu0 0
      %921 = vmatpush1.bf16.msra.mxu0 0
      %922 = vmatprep.subr.bf16.mxu0 0
      %923 = vmatpush1.bf16.msra.mxu0 0
      %924 = vmatprep.mubr.bf16.mxu0 0
      %925 = vmatmul.mubr.bf16.gmra.mrb[0].mxu0 %v845
      %v926 = vpop.f32.mrb[0].mxu0
      %v927 = vadd.f32 %v829, %v926
      %v928 = vpop.f32.mrb[0].mxu0
      %v929 = vpop.f32.mrb[0].mxu0
      %v930 = vadd.f32 %v829, %v929
      %v931 = vpop.f32.mrb[0].mxu0
      %932 = vmatprep.mubr.bf16.mxu0 0
      %933 = vmatmul.mubr.bf16.gmra.mrb[0].mxu0 %v848
      %v934 = vpop.f32.mrb[0].mxu0
      %v935 = vadd.f32 %v829, %v934
      %v936 = vpop.f32.mrb[0].mxu0
      %v937 = vpop.f32.mrb[0].mxu0
      %v938 = vadd.f32 %v829, %v937
      %v939 = vpop.f32.mrb[0].mxu0
      %940 = vmatprep.mubr.bf16.mxu0 0
      %941 = vmatmul.mubr.bf16.gmra.mrb[0].mxu0 %v851
      %v942 = vpop.f32.mrb[0].mxu0
      %v943 = vadd.f32 %v829, %v942
      %v944 = vpop.f32.mrb[0].mxu0
      %v945 = vpop.f32.mrb[0].mxu0
      %v946 = vadd.f32 %v829, %v945
      %v947 = vpop.f32.mrb[0].mxu0
      %948 = vmatprep.mubr.bf16.mxu0 0
      %949 = vmatmul.mubr.bf16.gmra.mrb[0].mxu0 %v854
      %v950 = vpop.f32.mrb[0].mxu0
      %v951 = vadd.f32 %v829, %v950
      %v952 = vpop.f32.mrb[0].mxu0
      %v953 = vpop.f32.mrb[0].mxu0
      %v954 = vadd.f32 %v829, %v953
      %v955 = vpop.f32.mrb[0].mxu0
      %956 = vmatprep.mubr.bf16.mxu0 0
      %957 = vmatmul.mubr.bf16.gmra.mrb[0].mxu0 %v857
      %v958 = vpop.f32.mrb[0].mxu0
      %v959 = vadd.f32 %v829, %v958
      %v960 = vpop.f32.mrb[0].mxu0
      %v961 = vpop.f32.mrb[0].mxu0
      %v962 = vadd.f32 %v829, %v961
      %v963 = vpop.f32.mrb[0].mxu0
      %964 = vmatprep.mubr.bf16.mxu0 0
      %965 = vmatmul.mubr.bf16.gmra.mrb[0].mxu0 %v860
      %v966 = vpop.f32.mrb[0].mxu0
      %v967 = vadd.f32 %v829, %v966
      %v968 = vpop.f32.mrb[0].mxu0
      %v969 = vpop.f32.mrb[0].mxu0
      %v970 = vadd.f32 %v829, %v969
      %v971 = vpop.f32.mrb[0].mxu0
      %972 = vmatprep.mubr.bf16.mxu0 0
      %973 = vmatmul.mubr.bf16.gmra.mrb[0].mxu0 %v863
      %v974 = vpop.f32.mrb[0].mxu0
      %v975 = vadd.f32 %v829, %v974
      %v976 = vpop.f32.mrb[0].mxu0
      %v977 = vpop.f32.mrb[0].mxu0
      %v978 = vadd.f32 %v829, %v977
      %v979 = vpop.f32.mrb[0].mxu0
      %980 = vmatprep.mubr.bf16.mxu0 0
      %981 = vmatmul.mubr.bf16.gmra.mrb[0].mxu0 %v866
      %v982 = vpop.f32.mrb[0].mxu0
      %v983 = vadd.f32 %v829, %v982
      %v984 = vpop.f32.mrb[0].mxu0
      %v985 = vpop.f32.mrb[0].mxu0
      %v986 = vadd.f32 %v829, %v985
      %v987 = vpop.f32.mrb[0].mxu0
      %988 = vmatprep.mubr.bf16.mxu0 0
      %989 = vmatmul.mubr.bf16.gmra.mrb[0].mxu0 %v869
      %v990 = vpop.f32.mrb[0].mxu0
      %v991 = vadd.f32 %v829, %v990
      %v992 = vpop.f32.mrb[0].mxu0
      %v993 = vpop.f32.mrb[0].mxu0
      %v994 = vadd.f32 %v829, %v993
      %v995 = vpop.f32.mrb[0].mxu0
      %996 = vmatprep.mubr.bf16.mxu0 0
      %997 = vmatmul.mubr.bf16.gmra.mrb[0].mxu0 %v872
      %v998 = vpop.f32.mrb[0].mxu0
      %v999 = vadd.f32 %v829, %v998
      %v1000 = vpop.f32.mrb[0].mxu0
      %v1001 = vpop.f32.mrb[0].mxu0
      %v1002 = vadd.f32 %v829, %v1001
      %v1003 = vpop.f32.mrb[0].mxu0
      %1004 = vmatprep.mubr.bf16.mxu0 0
      %1005 = vmatmul.mubr.bf16.gmra.mrb[0].mxu0 %v875
      %v1006 = vpop.f32.mrb[0].mxu0
      %v1007 = vadd.f32 %v829, %v1006
      %v1008 = vpop.f32.mrb[0].mxu0
      %v1009 = vpop.f32.mrb[0].mxu0
      %v1010 = vadd.f32 %v829, %v1009
      %v1011 = vpop.f32.mrb[0].mxu0
      %1012 = vmatprep.mubr.bf16.mxu0 0
      %1013 = vmatmul.mubr.bf16.gmra.mrb[0].mxu0 %v878
      %v1014 = vpop.f32.mrb[0].mxu0
      %v1015 = vadd.f32 %v829, %v1014
      %v1016 = vpop.f32.mrb[0].mxu0
      %v1017 = vpop.f32.mrb[0].mxu0
      %v1018 = vadd.f32 %v829, %v1017
      %v1019 = vpop.f32.mrb[0].mxu0
      %1020 = vmatprep.mubr.bf16.mxu0 0
      %1021 = vmatmul.mubr.bf16.gmra.mrb[0].mxu0 %v881
      %v1022 = vpop.f32.mrb[0].mxu0
      %v1023 = vadd.f32 %v829, %v1022
      %v1024 = vpop.f32.mrb[0].mxu0
      %v1025 = vpop.f32.mrb[0].mxu0
      %v1026 = vadd.f32 %v829, %v1025
      %v1027 = vpop.f32.mrb[0].mxu0
      %1028 = vmatprep.mubr.bf16.mxu0 0
      %1029 = vmatmul.mubr.bf16.gmra.mrb[0].mxu0 %v884
      %v1030 = vpop.f32.mrb[0].mxu0
      %v1031 = vadd.f32 %v829, %v1030
      %v1032 = vpop.f32.mrb[0].mxu0
      %v1033 = vpop.f32.mrb[0].mxu0
      %v1034 = vadd.f32 %v829, %v1033
      %v1035 = vpop.f32.mrb[0].mxu0
      %1036 = vmatprep.mubr.bf16.mxu0 0
      %1037 = vmatmul.mubr.bf16.gmra.mrb[0].mxu0 %v887
      %v1038 = vpop.f32.mrb[0].mxu0
      %v1039 = vadd.f32 %v829, %v1038
      %v1040 = vpop.f32.mrb[0].mxu0
      %v1041 = vpop.f32.mrb[0].mxu0
      %v1042 = vadd.f32 %v829, %v1041
      %v1043 = vpop.f32.mrb[0].mxu0
      %1044 = vmatprep.mubr.bf16.mxu0 0
      %1045 = vmatmul.mubr.bf16.gmra.mrb[0].mxu0 %v890
      %v1046 = vpop.f32.mrb[0].mxu0
      %v1047 = vadd.f32 %v829, %v1046
      %v1048 = vpop.f32.mrb[0].mxu0
      %v1049 = vpop.f32.mrb[0].mxu0
      %v1050 = vadd.f32 %v829, %v1049
      %v1051 = vpop.f32.mrb[0].mxu0
      %1052 = vdwg.mxu0
      %v1053 = vmax.f32 %v927, 0.0
      %v1054 = vmax.f32 %v930, 0.0
      %v1055 = vmax.f32 %v935, 0.0
      %v1056 = vmax.f32 %v938, 0.0
      %v1057 = vmax.f32 %v943, 0.0
      %v1058 = vmax.f32 %v946, 0.0
      %v1059 = vmax.f32 %v951, 0.0
      %v1060 = vmax.f32 %v954, 0.0
      %v1061 = vmax.f32 %v959, 0.0
      %v1062 = vmax.f32 %v962, 0.0
      %v1063 = vmax.f32 %v967, 0.0
      %v1064 = vmax.f32 %v970, 0.0
      %v1065 = vmax.f32 %v975, 0.0
      %v1066 = vmax.f32 %v978, 0.0
      %v1067 = vmax.f32 %v983, 0.0
      %v1068 = vmax.f32 %v986, 0.0
      %v1069 = vmax.f32 %v991, 0.0
      %v1070 = vmax.f32 %v994, 0.0
      %v1071 = vmax.f32 %v999, 0.0
      %v1072 = vmax.f32 %v1002, 0.0
      %v1073 = vmax.f32 %v1007, 0.0
      %v1074 = vmax.f32 %v1010, 0.0
      %v1075 = vmax.f32 %v1015, 0.0
      %v1076 = vmax.f32 %v1018, 0.0
      %v1077 = vmax.f32 %v1023, 0.0
      %v1078 = vmax.f32 %v1026, 0.0
      %v1079 = vmax.f32 %v1031, 0.0
      %v1080 = vmax.f32 %v1034, 0.0
      %v1081 = vmax.f32 %v1039, 0.0
      %v1082 = vmax.f32 %v1042, 0.0
      %v1083 = vmax.f32 %v1047, 0.0
      %v1084 = vmax.f32 %v1050, 0.0
      %v1085 = vpack.c.bf16 %v1054, %v1053
      %v1086 = vpack.c.bf16 %v1056, %v1055
      %v1087 = vpack.c.bf16 %v1058, %v1057
      %v1088 = vpack.c.bf16 %v1060, %v1059
      %v1089 = vpack.c.bf16 %v1062, %v1061
      %v1090 = vpack.c.bf16 %v1064, %v1063
      %v1091 = vpack.c.bf16 %v1066, %v1065
      %v1092 = vpack.c.bf16 %v1068, %v1067
      %v1093 = vpack.c.bf16 %v1070, %v1069
      %v1094 = vpack.c.bf16 %v1072, %v1071
      %v1095 = vpack.c.bf16 %v1074, %v1073
      %v1096 = vpack.c.bf16 %v1076, %v1075
      %v1097 = vpack.c.bf16 %v1078, %v1077
      %v1098 = vpack.c.bf16 %v1080, %v1079
      %v1099 = vpack.c.bf16 %v1082, %v1081
      %v1100 = vpack.c.bf16 %v1084, %v1083
      %v1101 = vld [vmem:[%s5] sm:$0xf]
      %v1102 = vld [vmem:[%s5 + $0x4] sm:$0xf]
      %v1103 = vld [vmem:[%s5 + $0x8] sm:$0xf]
      %v1104 = vld [vmem:[%s5 + $0xc] sm:$0xf]
      %v1105 = vld [vmem:[%s5 + $0x10] sm:$0xf]
      %v1106 = vld [vmem:[%s5 + $0x14] sm:$0xf]
      %v1107 = vld [vmem:[%s5 + $0x18] sm:$0xf]
      %v1108 = vld [vmem:[%s5 + $0x1c] sm:$0xf]
      %v1109 = vld [vmem:[%s6] sm:$0x1]
      %v1111 = vlaneseq
      %v1112 = vshrl.u32 %v1111, 7
      %v1113 = vsub.s32 0, %v1112
      %v1114 = vrot.slane %v1109, %v1113
      %v1124 = vunpack.c.l.b16 %v1101
      %v1125 = vunpack.c.l.b16 %v1102
      %v1126 = vunpack.c.l.b16 %v1103
      %v1127 = vunpack.c.l.b16 %v1104
      %v1128 = vunpack.c.l.b16 %v1105
      %v1129 = vunpack.c.l.b16 %v1106
      %v1130 = vunpack.c.l.b16 %v1107
      %v1131 = vunpack.c.l.b16 %v1108
      %v1132 = vpack.c.b16 %v1125, %v1124
      %v1133 = vpack.c.b16 %v1127, %v1126
      %v1134 = vpack.c.b16 %v1129, %v1128
      %v1135 = vpack.c.b16 %v1131, %v1130
      %vm1140 = vcmask 523264
      %v1142 = vsel %vm1140, %v1085, 0
      %v1145 = vsel %vm1140, %v1086, 0
      %v1148 = vsel %vm1140, %v1087, 0
      %v1151 = vsel %vm1140, %v1088, 0
      %v1154 = vsel %vm1140, %v1089, 0
      %v1157 = vsel %vm1140, %v1090, 0
      %v1160 = vsel %vm1140, %v1091, 0
      %v1163 = vsel %vm1140, %v1092, 0
      %v1166 = vsel %vm1140, %v1093, 0
      %v1169 = vsel %vm1140, %v1094, 0
      %v1172 = vsel %vm1140, %v1095, 0
      %v1175 = vsel %vm1140, %v1096, 0
      %v1178 = vsel %vm1140, %v1097, 0
      %v1181 = vsel %vm1140, %v1098, 0
      %v1184 = vsel %vm1140, %v1099, 0
      %v1187 = vsel %vm1140, %v1100, 0
      %1189 = vmatprep.subr.bf16.mxu0 0
      %1190 = vmatpush1.bf16.msra.mxu0 %v1132
      %1191 = vmatprep.subr.bf16.mxu0 0
      %1192 = vmatpush1.bf16.msra.mxu0 %v1133
      %1193 = vmatprep.subr.bf16.mxu0 0
      %1194 = vmatpush1.bf16.msra.mxu0 %v1134
      %1195 = vmatprep.subr.bf16.mxu0 0
      %1196 = vmatpush1.bf16.msra.mxu0 %v1135
      %1197 = vmatprep.subr.bf16.mxu0 0
      %1198 = vmatpush1.bf16.msra.mxu0 0
      %1199 = vmatprep.subr.bf16.mxu0 0
      %1200 = vmatpush1.bf16.msra.mxu0 0
      %1201 = vmatprep.subr.bf16.mxu0 0
      %1202 = vmatpush1.bf16.msra.mxu0 0
      %1203 = vmatprep.subr.bf16.mxu0 0
      %1204 = vmatpush1.bf16.msra.mxu0 0
      %1205 = vmatprep.subr.bf16.mxu0 0
      %1206 = vmatpush1.bf16.msra.mxu0 0
      %1207 = vmatprep.subr.bf16.mxu0 0
      %1208 = vmatpush1.bf16.msra.mxu0 0
      %1209 = vmatprep.subr.bf16.mxu0 0
      %1210 = vmatpush1.bf16.msra.mxu0 0
      %1211 = vmatprep.subr.bf16.mxu0 0
      %1212 = vmatpush1.bf16.msra.mxu0 0
      %1213 = vmatprep.subr.bf16.mxu0 0
      %1214 = vmatpush1.bf16.msra.mxu0 0
      %1215 = vmatprep.subr.bf16.mxu0 0
      %1216 = vmatpush1.bf16.msra.mxu0 0
      %1217 = vmatprep.subr.bf16.mxu0 0
      %1218 = vmatpush1.bf16.msra.mxu0 0
      %1219 = vmatprep.subr.bf16.mxu0 0
      %1220 = vmatpush1.bf16.msra.mxu0 0
      %1221 = vmatprep.mubr.bf16.mxu0 0
      %1222 = vmatmul.mubr.bf16.gmra.mrb[0].mxu0 %v1142
      %v1223 = vpop.f32.mrb[0].mxu0
      %v1224 = vadd.f32 %v1114, %v1223
      %v1225 = vpop.f32.mrb[0].mxu0
      %v1226 = vpop.f32.mrb[0].mxu0
      %v1227 = vadd.f32 %v1114, %v1226
      %v1228 = vpop.f32.mrb[0].mxu0
      %1229 = vmatprep.mubr.bf16.mxu0 0
      %1230 = vmatmul.mubr.bf16.gmra.mrb[0].mxu0 %v1145
      %v1231 = vpop.f32.mrb[0].mxu0
      %v1232 = vadd.f32 %v1114, %v1231
      %v1233 = vpop.f32.mrb[0].mxu0
      %v1234 = vpop.f32.mrb[0].mxu0
      %v1235 = vadd.f32 %v1114, %v1234
      %v1236 = vpop.f32.mrb[0].mxu0
      %1237 = vmatprep.mubr.bf16.mxu0 0
      %1238 = vmatmul.mubr.bf16.gmra.mrb[0].mxu0 %v1148
      %v1239 = vpop.f32.mrb[0].mxu0
      %v1240 = vadd.f32 %v1114, %v1239
      %v1241 = vpop.f32.mrb[0].mxu0
      %v1242 = vpop.f32.mrb[0].mxu0
      %v1243 = vadd.f32 %v1114, %v1242
      %v1244 = vpop.f32.mrb[0].mxu0
      %1245 = vmatprep.mubr.bf16.mxu0 0
      %1246 = vmatmul.mubr.bf16.gmra.mrb[0].mxu0 %v1151
      %v1247 = vpop.f32.mrb[0].mxu0
      %v1248 = vadd.f32 %v1114, %v1247
      %v1249 = vpop.f32.mrb[0].mxu0
      %v1250 = vpop.f32.mrb[0].mxu0
      %v1251 = vadd.f32 %v1114, %v1250
      %v1252 = vpop.f32.mrb[0].mxu0
      %1253 = vmatprep.mubr.bf16.mxu0 0
      %1254 = vmatmul.mubr.bf16.gmra.mrb[0].mxu0 %v1154
      %v1255 = vpop.f32.mrb[0].mxu0
      %v1256 = vadd.f32 %v1114, %v1255
      %v1257 = vpop.f32.mrb[0].mxu0
      %v1258 = vpop.f32.mrb[0].mxu0
      %v1259 = vadd.f32 %v1114, %v1258
      %v1260 = vpop.f32.mrb[0].mxu0
      %1261 = vmatprep.mubr.bf16.mxu0 0
      %1262 = vmatmul.mubr.bf16.gmra.mrb[0].mxu0 %v1157
      %v1263 = vpop.f32.mrb[0].mxu0
      %v1264 = vadd.f32 %v1114, %v1263
      %v1265 = vpop.f32.mrb[0].mxu0
      %v1266 = vpop.f32.mrb[0].mxu0
      %v1267 = vadd.f32 %v1114, %v1266
      %v1268 = vpop.f32.mrb[0].mxu0
      %1269 = vmatprep.mubr.bf16.mxu0 0
      %1270 = vmatmul.mubr.bf16.gmra.mrb[0].mxu0 %v1160
      %v1271 = vpop.f32.mrb[0].mxu0
      %v1272 = vadd.f32 %v1114, %v1271
      %v1273 = vpop.f32.mrb[0].mxu0
      %v1274 = vpop.f32.mrb[0].mxu0
      %v1275 = vadd.f32 %v1114, %v1274
      %v1276 = vpop.f32.mrb[0].mxu0
      %1277 = vmatprep.mubr.bf16.mxu0 0
      %1278 = vmatmul.mubr.bf16.gmra.mrb[0].mxu0 %v1163
      %v1279 = vpop.f32.mrb[0].mxu0
      %v1280 = vadd.f32 %v1114, %v1279
      %v1281 = vpop.f32.mrb[0].mxu0
      %v1282 = vpop.f32.mrb[0].mxu0
      %v1283 = vadd.f32 %v1114, %v1282
      %v1284 = vpop.f32.mrb[0].mxu0
      %1285 = vmatprep.mubr.bf16.mxu0 0
      %1286 = vmatmul.mubr.bf16.gmra.mrb[0].mxu0 %v1166
      %v1287 = vpop.f32.mrb[0].mxu0
      %v1288 = vadd.f32 %v1114, %v1287
      %v1289 = vpop.f32.mrb[0].mxu0
      %v1290 = vpop.f32.mrb[0].mxu0
      %v1291 = vadd.f32 %v1114, %v1290
      %v1292 = vpop.f32.mrb[0].mxu0
      %1293 = vmatprep.mubr.bf16.mxu0 0
      %1294 = vmatmul.mubr.bf16.gmra.mrb[0].mxu0 %v1169
      %v1295 = vpop.f32.mrb[0].mxu0
      %v1296 = vadd.f32 %v1114, %v1295
      %v1297 = vpop.f32.mrb[0].mxu0
      %v1298 = vpop.f32.mrb[0].mxu0
      %v1299 = vadd.f32 %v1114, %v1298
      %v1300 = vpop.f32.mrb[0].mxu0
      %1301 = vmatprep.mubr.bf16.mxu0 0
      %1302 = vmatmul.mubr.bf16.gmra.mrb[0].mxu0 %v1172
      %v1303 = vpop.f32.mrb[0].mxu0
      %v1304 = vadd.f32 %v1114, %v1303
      %v1305 = vpop.f32.mrb[0].mxu0
      %v1306 = vpop.f32.mrb[0].mxu0
      %v1307 = vadd.f32 %v1114, %v1306
      %v1308 = vpop.f32.mrb[0].mxu0
      %1309 = vmatprep.mubr.bf16.mxu0 0
      %1310 = vmatmul.mubr.bf16.gmra.mrb[0].mxu0 %v1175
      %v1311 = vpop.f32.mrb[0].mxu0
      %v1312 = vadd.f32 %v1114, %v1311
      %v1313 = vpop.f32.mrb[0].mxu0
      %v1314 = vpop.f32.mrb[0].mxu0
      %v1315 = vadd.f32 %v1114, %v1314
      %v1316 = vpop.f32.mrb[0].mxu0
      %1317 = vmatprep.mubr.bf16.mxu0 0
      %1318 = vmatmul.mubr.bf16.gmra.mrb[0].mxu0 %v1178
      %v1319 = vpop.f32.mrb[0].mxu0
      %v1320 = vadd.f32 %v1114, %v1319
      %v1321 = vpop.f32.mrb[0].mxu0
      %v1322 = vpop.f32.mrb[0].mxu0
      %v1323 = vadd.f32 %v1114, %v1322
      %v1324 = vpop.f32.mrb[0].mxu0
      %1325 = vmatprep.mubr.bf16.mxu0 0
      %1326 = vmatmul.mubr.bf16.gmra.mrb[0].mxu0 %v1181
      %v1327 = vpop.f32.mrb[0].mxu0
      %v1328 = vadd.f32 %v1114, %v1327
      %v1329 = vpop.f32.mrb[0].mxu0
      %v1330 = vpop.f32.mrb[0].mxu0
      %v1331 = vadd.f32 %v1114, %v1330
      %v1332 = vpop.f32.mrb[0].mxu0
      %1333 = vmatprep.mubr.bf16.mxu0 0
      %1334 = vmatmul.mubr.bf16.gmra.mrb[0].mxu0 %v1184
      %v1335 = vpop.f32.mrb[0].mxu0
      %v1336 = vadd.f32 %v1114, %v1335
      %v1337 = vpop.f32.mrb[0].mxu0
      %v1338 = vpop.f32.mrb[0].mxu0
      %v1339 = vadd.f32 %v1114, %v1338
      %v1340 = vpop.f32.mrb[0].mxu0
      %1341 = vmatprep.mubr.bf16.mxu0 0
      %1342 = vmatmul.mubr.bf16.gmra.mrb[0].mxu0 %v1187
      %v1343 = vpop.f32.mrb[0].mxu0
      %v1344 = vadd.f32 %v1114, %v1343
      %v1345 = vpop.f32.mrb[0].mxu0
      %v1346 = vpop.f32.mrb[0].mxu0
      %v1347 = vadd.f32 %v1114, %v1346
      %v1348 = vpop.f32.mrb[0].mxu0
      %1349 = vdwg.mxu0
      %v1350 = vmax.f32 %v1224, 0.0
      %v1351 = vmax.f32 %v1227, 0.0
      %v1352 = vmax.f32 %v1232, 0.0
      %v1353 = vmax.f32 %v1235, 0.0
      %v1354 = vmax.f32 %v1240, 0.0
      %v1355 = vmax.f32 %v1243, 0.0
      %v1356 = vmax.f32 %v1248, 0.0
      %v1357 = vmax.f32 %v1251, 0.0
      %v1358 = vmax.f32 %v1256, 0.0
      %v1359 = vmax.f32 %v1259, 0.0
      %v1360 = vmax.f32 %v1264, 0.0
      %v1361 = vmax.f32 %v1267, 0.0
      %v1362 = vmax.f32 %v1272, 0.0
      %v1363 = vmax.f32 %v1275, 0.0
      %v1364 = vmax.f32 %v1280, 0.0
      %v1365 = vmax.f32 %v1283, 0.0
      %v1366 = vmax.f32 %v1288, 0.0
      %v1367 = vmax.f32 %v1291, 0.0
      %v1368 = vmax.f32 %v1296, 0.0
      %v1369 = vmax.f32 %v1299, 0.0
      %v1370 = vmax.f32 %v1304, 0.0
      %v1371 = vmax.f32 %v1307, 0.0
      %v1372 = vmax.f32 %v1312, 0.0
      %v1373 = vmax.f32 %v1315, 0.0
      %v1374 = vmax.f32 %v1320, 0.0
      %v1375 = vmax.f32 %v1323, 0.0
      %v1376 = vmax.f32 %v1328, 0.0
      %v1377 = vmax.f32 %v1331, 0.0
      %v1378 = vmax.f32 %v1336, 0.0
      %v1379 = vmax.f32 %v1339, 0.0
      %v1380 = vmax.f32 %v1344, 0.0
      %v1381 = vmax.f32 %v1347, 0.0
      %v1382 = vpack.c.bf16 %v1351, %v1350
      %v1383 = vpack.c.bf16 %v1353, %v1352
      %v1384 = vpack.c.bf16 %v1355, %v1354
      %v1385 = vpack.c.bf16 %v1357, %v1356
      %v1386 = vpack.c.bf16 %v1359, %v1358
      %v1387 = vpack.c.bf16 %v1361, %v1360
      %v1388 = vpack.c.bf16 %v1363, %v1362
      %v1389 = vpack.c.bf16 %v1365, %v1364
      %v1390 = vpack.c.bf16 %v1367, %v1366
      %v1391 = vpack.c.bf16 %v1369, %v1368
      %v1392 = vpack.c.bf16 %v1371, %v1370
      %v1393 = vpack.c.bf16 %v1373, %v1372
      %v1394 = vpack.c.bf16 %v1375, %v1374
      %v1395 = vpack.c.bf16 %v1377, %v1376
      %v1396 = vpack.c.bf16 %v1379, %v1378
      %v1397 = vpack.c.bf16 %v1381, %v1380
      %v1398 = vld [vmem:[%s7] sm:$0xf]
      %v1399 = vld [vmem:[%s7 + $0x4] sm:$0xf]
      %v1400 = vld [vmem:[%s7 + $0x8] sm:$0xf]
      %v1401 = vld [vmem:[%s7 + $0xc] sm:$0xf]
      %v1402 = vld [vmem:[%s7 + $0x10] sm:$0xf]
      %v1403 = vld [vmem:[%s7 + $0x14] sm:$0xf]
      %v1404 = vld [vmem:[%s7 + $0x18] sm:$0xf]
      %v1405 = vld [vmem:[%s7 + $0x1c] sm:$0xf]
      %v1406 = vld [vmem:[%s7 + $0x20] sm:$0xf]
      %v1407 = vld [vmem:[%s7 + $0x24] sm:$0xf]
      %v1408 = vld [vmem:[%s7 + $0x28] sm:$0xf]
      %v1409 = vld [vmem:[%s7 + $0x2c] sm:$0xf]
      %v1410 = vld [vmem:[%s7 + $0x30] sm:$0xf]
      %v1411 = vld [vmem:[%s7 + $0x34] sm:$0xf]
      %v1412 = vld [vmem:[%s7 + $0x38] sm:$0xf]
      %v1413 = vld [vmem:[%s7 + $0x3c] sm:$0xf]
      %v1414 = vld [vmem:[%s8] sm:$0x1]
      %v1416 = vlaneseq
      %v1417 = vshrl.u32 %v1416, 7
      %v1418 = vsub.s32 0, %v1417
      %v1419 = vrot.slane %v1414, %v1418
      %v1437 = vunpack.c.l.b16 %v1398
      %v1438 = vunpack.c.l.b16 %v1399
      %v1439 = vunpack.c.l.b16 %v1400
      %v1440 = vunpack.c.l.b16 %v1401
      %v1441 = vunpack.c.l.b16 %v1402
      %v1442 = vunpack.c.l.b16 %v1403
      %v1443 = vunpack.c.l.b16 %v1404
      %v1444 = vunpack.c.l.b16 %v1405
      %v1445 = vunpack.c.l.b16 %v1406
      %v1446 = vunpack.c.l.b16 %v1407
      %v1447 = vunpack.c.l.b16 %v1408
      %v1448 = vunpack.c.l.b16 %v1409
      %v1449 = vunpack.c.l.b16 %v1410
      %v1450 = vunpack.c.l.b16 %v1411
      %v1451 = vunpack.c.l.b16 %v1412
      %v1452 = vunpack.c.l.b16 %v1413
      %v1453 = vpack.c.b16 %v1438, %v1437
      %v1454 = vpack.c.b16 %v1440, %v1439
      %v1455 = vpack.c.b16 %v1442, %v1441
      %v1456 = vpack.c.b16 %v1444, %v1443
      %v1457 = vpack.c.b16 %v1446, %v1445
      %v1458 = vpack.c.b16 %v1448, %v1447
      %v1459 = vpack.c.b16 %v1450, %v1449
      %v1460 = vpack.c.b16 %v1452, %v1451
      %1469 = vmatprep.subr.bf16.mxu0 0
      %1470 = vmatpush1.bf16.msra.mxu0 %v1453
      %1471 = vmatprep.subr.bf16.mxu0 0
      %1472 = vmatpush1.bf16.msra.mxu0 %v1454
      %1473 = vmatprep.subr.bf16.mxu0 0
      %1474 = vmatpush1.bf16.msra.mxu0 %v1455
      %1475 = vmatprep.subr.bf16.mxu0 0
      %1476 = vmatpush1.bf16.msra.mxu0 %v1456
      %1477 = vmatprep.subr.bf16.mxu0 0
      %1478 = vmatpush1.bf16.msra.mxu0 %v1457
      %1479 = vmatprep.subr.bf16.mxu0 0
      %1480 = vmatpush1.bf16.msra.mxu0 %v1458
      %1481 = vmatprep.subr.bf16.mxu0 0
      %1482 = vmatpush1.bf16.msra.mxu0 %v1459
      %1483 = vmatprep.subr.bf16.mxu0 0
      %1484 = vmatpush1.bf16.msra.mxu0 %v1460
      %1485 = vmatprep.subr.bf16.mxu0 0
      %1486 = vmatpush1.bf16.msra.mxu0 0
      %1487 = vmatprep.subr.bf16.mxu0 0
      %1488 = vmatpush1.bf16.msra.mxu0 0
      %1489 = vmatprep.subr.bf16.mxu0 0
      %1490 = vmatpush1.bf16.msra.mxu0 0
      %1491 = vmatprep.subr.bf16.mxu0 0
      %1492 = vmatpush1.bf16.msra.mxu0 0
      %1493 = vmatprep.subr.bf16.mxu0 0
      %1494 = vmatpush1.bf16.msra.mxu0 0
      %1495 = vmatprep.subr.bf16.mxu0 0
      %1496 = vmatpush1.bf16.msra.mxu0 0
      %1497 = vmatprep.subr.bf16.mxu0 0
      %1498 = vmatpush1.bf16.msra.mxu0 0
      %1499 = vmatprep.subr.bf16.mxu0 0
      %1500 = vmatpush1.bf16.msra.mxu0 0
      %1501 = vmatprep.mubr.bf16.mxu0 0
      %1502 = vmatmul.mubr.bf16.gmra.mrb[0].mxu0 %v1382
      %v1503 = vpop.f32.mrb[0].mxu0
      %v1504 = vadd.f32 %v1419, %v1503
      %v1505 = vpop.f32.mrb[0].mxu0
      %v1506 = vpop.f32.mrb[0].mxu0
      %v1507 = vadd.f32 %v1419, %v1506
      %v1508 = vpop.f32.mrb[0].mxu0
      %1509 = vmatprep.mubr.bf16.mxu0 0
      %1510 = vmatmul.mubr.bf16.gmra.mrb[0].mxu0 %v1383
      %v1511 = vpop.f32.mrb[0].mxu0
      %v1512 = vadd.f32 %v1419, %v1511
      %v1513 = vpop.f32.mrb[0].mxu0
      %v1514 = vpop.f32.mrb[0].mxu0
      %v1515 = vadd.f32 %v1419, %v1514
      %v1516 = vpop.f32.mrb[0].mxu0
      %1517 = vmatprep.mubr.bf16.mxu0 0
      %1518 = vmatmul.mubr.bf16.gmra.mrb[0].mxu0 %v1384
      %v1519 = vpop.f32.mrb[0].mxu0
      %v1520 = vadd.f32 %v1419, %v1519
      %v1521 = vpop.f32.mrb[0].mxu0
      %v1522 = vpop.f32.mrb[0].mxu0
      %v1523 = vadd.f32 %v1419, %v1522
      %v1524 = vpop.f32.mrb[0].mxu0
      %1525 = vmatprep.mubr.bf16.mxu0 0
      %1526 = vmatmul.mubr.bf16.gmra.mrb[0].mxu0 %v1385
      %v1527 = vpop.f32.mrb[0].mxu0
      %v1528 = vadd.f32 %v1419, %v1527
      %v1529 = vpop.f32.mrb[0].mxu0
      %v1530 = vpop.f32.mrb[0].mxu0
      %v1531 = vadd.f32 %v1419, %v1530
      %v1532 = vpop.f32.mrb[0].mxu0
      %1533 = vmatprep.mubr.bf16.mxu0 0
      %1534 = vmatmul.mubr.bf16.gmra.mrb[0].mxu0 %v1386
      %v1535 = vpop.f32.mrb[0].mxu0
      %v1536 = vadd.f32 %v1419, %v1535
      %v1537 = vpop.f32.mrb[0].mxu0
      %v1538 = vpop.f32.mrb[0].mxu0
      %v1539 = vadd.f32 %v1419, %v1538
      %v1540 = vpop.f32.mrb[0].mxu0
      %1541 = vmatprep.mubr.bf16.mxu0 0
      %1542 = vmatmul.mubr.bf16.gmra.mrb[0].mxu0 %v1387
      %v1543 = vpop.f32.mrb[0].mxu0
      %v1544 = vadd.f32 %v1419, %v1543
      %v1545 = vpop.f32.mrb[0].mxu0
      %v1546 = vpop.f32.mrb[0].mxu0
      %v1547 = vadd.f32 %v1419, %v1546
      %v1548 = vpop.f32.mrb[0].mxu0
      %1549 = vmatprep.mubr.bf16.mxu0 0
      %1550 = vmatmul.mubr.bf16.gmra.mrb[0].mxu0 %v1388
      %v1551 = vpop.f32.mrb[0].mxu0
      %v1552 = vadd.f32 %v1419, %v1551
      %v1553 = vpop.f32.mrb[0].mxu0
      %v1554 = vpop.f32.mrb[0].mxu0
      %v1555 = vadd.f32 %v1419, %v1554
      %v1556 = vpop.f32.mrb[0].mxu0
      %1557 = vmatprep.mubr.bf16.mxu0 0
      %1558 = vmatmul.mubr.bf16.gmra.mrb[0].mxu0 %v1389
      %v1559 = vpop.f32.mrb[0].mxu0
      %v1560 = vadd.f32 %v1419, %v1559
      %v1561 = vpop.f32.mrb[0].mxu0
      %v1562 = vpop.f32.mrb[0].mxu0
      %v1563 = vadd.f32 %v1419, %v1562
      %v1564 = vpop.f32.mrb[0].mxu0
      %1565 = vmatprep.mubr.bf16.mxu0 0
      %1566 = vmatmul.mubr.bf16.gmra.mrb[0].mxu0 %v1390
      %v1567 = vpop.f32.mrb[0].mxu0
      %v1568 = vadd.f32 %v1419, %v1567
      %v1569 = vpop.f32.mrb[0].mxu0
      %v1570 = vpop.f32.mrb[0].mxu0
      %v1571 = vadd.f32 %v1419, %v1570
      %v1572 = vpop.f32.mrb[0].mxu0
      %1573 = vmatprep.mubr.bf16.mxu0 0
      %1574 = vmatmul.mubr.bf16.gmra.mrb[0].mxu0 %v1391
      %v1575 = vpop.f32.mrb[0].mxu0
      %v1576 = vadd.f32 %v1419, %v1575
      %v1577 = vpop.f32.mrb[0].mxu0
      %v1578 = vpop.f32.mrb[0].mxu0
      %v1579 = vadd.f32 %v1419, %v1578
      %v1580 = vpop.f32.mrb[0].mxu0
      %1581 = vmatprep.mubr.bf16.mxu0 0
      %1582 = vmatmul.mubr.bf16.gmra.mrb[0].mxu0 %v1392
      %v1583 = vpop.f32.mrb[0].mxu0
      %v1584 = vadd.f32 %v1419, %v1583
      %v1585 = vpop.f32.mrb[0].mxu0
      %v1586 = vpop.f32.mrb[0].mxu0
      %v1587 = vadd.f32 %v1419, %v1586
      %v1588 = vpop.f32.mrb[0].mxu0
      %1589 = vmatprep.mubr.bf16.mxu0 0
      %1590 = vmatmul.mubr.bf16.gmra.mrb[0].mxu0 %v1393
      %v1591 = vpop.f32.mrb[0].mxu0
      %v1592 = vadd.f32 %v1419, %v1591
      %v1593 = vpop.f32.mrb[0].mxu0
      %v1594 = vpop.f32.mrb[0].mxu0
      %v1595 = vadd.f32 %v1419, %v1594
      %v1596 = vpop.f32.mrb[0].mxu0
      %1597 = vmatprep.mubr.bf16.mxu0 0
      %1598 = vmatmul.mubr.bf16.gmra.mrb[0].mxu0 %v1394
      %v1599 = vpop.f32.mrb[0].mxu0
      %v1600 = vadd.f32 %v1419, %v1599
      %v1601 = vpop.f32.mrb[0].mxu0
      %v1602 = vpop.f32.mrb[0].mxu0
      %v1603 = vadd.f32 %v1419, %v1602
      %v1604 = vpop.f32.mrb[0].mxu0
      %1605 = vmatprep.mubr.bf16.mxu0 0
      %1606 = vmatmul.mubr.bf16.gmra.mrb[0].mxu0 %v1395
      %v1607 = vpop.f32.mrb[0].mxu0
      %v1608 = vadd.f32 %v1419, %v1607
      %v1609 = vpop.f32.mrb[0].mxu0
      %v1610 = vpop.f32.mrb[0].mxu0
      %v1611 = vadd.f32 %v1419, %v1610
      %v1612 = vpop.f32.mrb[0].mxu0
      %1613 = vmatprep.mubr.bf16.mxu0 0
      %1614 = vmatmul.mubr.bf16.gmra.mrb[0].mxu0 %v1396
      %v1615 = vpop.f32.mrb[0].mxu0
      %v1616 = vadd.f32 %v1419, %v1615
      %v1617 = vpop.f32.mrb[0].mxu0
      %v1618 = vpop.f32.mrb[0].mxu0
      %v1619 = vadd.f32 %v1419, %v1618
      %v1620 = vpop.f32.mrb[0].mxu0
      %1621 = vmatprep.mubr.bf16.mxu0 0
      %1622 = vmatmul.mubr.bf16.gmra.mrb[0].mxu0 %v1397
      %v1623 = vpop.f32.mrb[0].mxu0
      %v1624 = vadd.f32 %v1419, %v1623
      %v1625 = vpop.f32.mrb[0].mxu0
      %v1626 = vpop.f32.mrb[0].mxu0
      %v1627 = vadd.f32 %v1419, %v1626
      %v1628 = vpop.f32.mrb[0].mxu0
      %1629 = vdwg.mxu0
      %v1630 = vmax.f32 %v1504, 0.0
      %v1631 = vmax.f32 %v1507, 0.0
      %v1632 = vmax.f32 %v1512, 0.0
      %v1633 = vmax.f32 %v1515, 0.0
      %v1634 = vmax.f32 %v1520, 0.0
      %v1635 = vmax.f32 %v1523, 0.0
      %v1636 = vmax.f32 %v1528, 0.0
      %v1637 = vmax.f32 %v1531, 0.0
      %v1638 = vmax.f32 %v1536, 0.0
      %v1639 = vmax.f32 %v1539, 0.0
      %v1640 = vmax.f32 %v1544, 0.0
      %v1641 = vmax.f32 %v1547, 0.0
      %v1642 = vmax.f32 %v1552, 0.0
      %v1643 = vmax.f32 %v1555, 0.0
      %v1644 = vmax.f32 %v1560, 0.0
      %v1645 = vmax.f32 %v1563, 0.0
      %v1646 = vmax.f32 %v1568, 0.0
      %v1647 = vmax.f32 %v1571, 0.0
      %v1648 = vmax.f32 %v1576, 0.0
      %v1649 = vmax.f32 %v1579, 0.0
      %v1650 = vmax.f32 %v1584, 0.0
      %v1651 = vmax.f32 %v1587, 0.0
      %v1652 = vmax.f32 %v1592, 0.0
      %v1653 = vmax.f32 %v1595, 0.0
      %v1654 = vmax.f32 %v1600, 0.0
      %v1655 = vmax.f32 %v1603, 0.0
      %v1656 = vmax.f32 %v1608, 0.0
      %v1657 = vmax.f32 %v1611, 0.0
      %v1658 = vmax.f32 %v1616, 0.0
      %v1659 = vmax.f32 %v1619, 0.0
      %v1660 = vmax.f32 %v1624, 0.0
      %v1661 = vmax.f32 %v1627, 0.0
      %v1662 = vpack.c.bf16 %v1631, %v1630
      %v1663 = vpack.c.bf16 %v1633, %v1632
      %v1664 = vpack.c.bf16 %v1635, %v1634
      %v1665 = vpack.c.bf16 %v1637, %v1636
      %v1666 = vpack.c.bf16 %v1639, %v1638
      %v1667 = vpack.c.bf16 %v1641, %v1640
      %v1668 = vpack.c.bf16 %v1643, %v1642
      %v1669 = vpack.c.bf16 %v1645, %v1644
      %v1670 = vpack.c.bf16 %v1647, %v1646
      %v1671 = vpack.c.bf16 %v1649, %v1648
      %v1672 = vpack.c.bf16 %v1651, %v1650
      %v1673 = vpack.c.bf16 %v1653, %v1652
      %v1674 = vpack.c.bf16 %v1655, %v1654
      %v1675 = vpack.c.bf16 %v1657, %v1656
      %v1676 = vpack.c.bf16 %v1659, %v1658
      %v1677 = vpack.c.bf16 %v1661, %v1660
      %v1678 = vld [vmem:[%s9] sm:$0xf]
      %v1679 = vld [vmem:[%s9 + $0x4] sm:$0xf]
      %v1680 = vld [vmem:[%s9 + $0x8] sm:$0xf]
      %v1681 = vld [vmem:[%s9 + $0xc] sm:$0xf]
      %v1682 = vld [vmem:[%s9 + $0x10] sm:$0xf]
      %v1683 = vld [vmem:[%s9 + $0x14] sm:$0xf]
      %v1684 = vld [vmem:[%s9 + $0x18] sm:$0xf]
      %v1685 = vld [vmem:[%s9 + $0x1c] sm:$0xf]
      %v1686 = vld [vmem:[%s9 + $0x20] sm:$0xf]
      %v1687 = vld [vmem:[%s9 + $0x24] sm:$0xf]
      %v1688 = vld [vmem:[%s9 + $0x28] sm:$0xf]
      %v1689 = vld [vmem:[%s9 + $0x2c] sm:$0xf]
      %v1690 = vld [vmem:[%s9 + $0x30] sm:$0xf]
      %v1691 = vld [vmem:[%s9 + $0x34] sm:$0xf]
      %v1692 = vld [vmem:[%s9 + $0x38] sm:$0xf]
      %v1693 = vld [vmem:[%s9 + $0x3c] sm:$0xf]
      %v1694 = vld [vmem:[%s10] sm:$0x1]
      %v1696 = vlaneseq
      %v1697 = vshrl.u32 %v1696, 7
      %v1698 = vsub.s32 0, %v1697
      %v1699 = vrot.slane %v1694, %v1698
      %v1717 = vunpack.c.l.b16 %v1678
      %v1718 = vunpack.c.l.b16 %v1679
      %v1719 = vunpack.c.l.b16 %v1680
      %v1720 = vunpack.c.l.b16 %v1681
      %v1721 = vunpack.c.l.b16 %v1682
      %v1722 = vunpack.c.l.b16 %v1683
      %v1723 = vunpack.c.l.b16 %v1684
      %v1724 = vunpack.c.l.b16 %v1685
      %v1725 = vunpack.c.l.b16 %v1686
      %v1726 = vunpack.c.l.b16 %v1687
      %v1727 = vunpack.c.l.b16 %v1688
      %v1728 = vunpack.c.l.b16 %v1689
      %v1729 = vunpack.c.l.b16 %v1690
      %v1730 = vunpack.c.l.b16 %v1691
      %v1731 = vunpack.c.l.b16 %v1692
      %v1732 = vunpack.c.l.b16 %v1693
      %v1733 = vpack.c.b16 %v1718, %v1717
      %v1734 = vpack.c.b16 %v1720, %v1719
      %v1735 = vpack.c.b16 %v1722, %v1721
      %v1736 = vpack.c.b16 %v1724, %v1723
      %v1737 = vpack.c.b16 %v1726, %v1725
      %v1738 = vpack.c.b16 %v1728, %v1727
      %v1739 = vpack.c.b16 %v1730, %v1729
      %v1740 = vpack.c.b16 %v1732, %v1731
      %1749 = vmatprep.subr.bf16.mxu0 0
      %1750 = vmatpush1.bf16.msra.mxu0 %v1733
      %1751 = vmatprep.subr.bf16.mxu0 0
      %1752 = vmatpush1.bf16.msra.mxu0 %v1734
      %1753 = vmatprep.subr.bf16.mxu0 0
      %1754 = vmatpush1.bf16.msra.mxu0 %v1735
      %1755 = vmatprep.subr.bf16.mxu0 0
      %1756 = vmatpush1.bf16.msra.mxu0 %v1736
      %1757 = vmatprep.subr.bf16.mxu0 0
      %1758 = vmatpush1.bf16.msra.mxu0 %v1737
      %1759 = vmatprep.subr.bf16.mxu0 0
      %1760 = vmatpush1.bf16.msra.mxu0 %v1738
      %1761 = vmatprep.subr.bf16.mxu0 0
      %1762 = vmatpush1.bf16.msra.mxu0 %v1739
      %1763 = vmatprep.subr.bf16.mxu0 0
      %1764 = vmatpush1.bf16.msra.mxu0 %v1740
      %1765 = vmatprep.subr.bf16.mxu0 0
      %1766 = vmatpush1.bf16.msra.mxu0 0
      %1767 = vmatprep.subr.bf16.mxu0 0
      %1768 = vmatpush1.bf16.msra.mxu0 0
      %1769 = vmatprep.subr.bf16.mxu0 0
      %1770 = vmatpush1.bf16.msra.mxu0 0
      %1771 = vmatprep.subr.bf16.mxu0 0
      %1772 = vmatpush1.bf16.msra.mxu0 0
      %1773 = vmatprep.subr.bf16.mxu0 0
      %1774 = vmatpush1.bf16.msra.mxu0 0
      %1775 = vmatprep.subr.bf16.mxu0 0
      %1776 = vmatpush1.bf16.msra.mxu0 0
      %1777 = vmatprep.subr.bf16.mxu0 0
      %1778 = vmatpush1.bf16.msra.mxu0 0
      %1779 = vmatprep.subr.bf16.mxu0 0
      %1780 = vmatpush1.bf16.msra.mxu0 0
      %1781 = vmatprep.mubr.bf16.mxu0 0
      %1782 = vmatmul.mubr.bf16.gmra.mrb[0].mxu0 %v1662
      %v1783 = vpop.f32.mrb[0].mxu0
      %v1784 = vadd.f32 %v1699, %v1783
      %v1785 = vpop.f32.mrb[0].mxu0
      %v1786 = vpop.f32.mrb[0].mxu0
      %v1787 = vadd.f32 %v1699, %v1786
      %v1788 = vpop.f32.mrb[0].mxu0
      %1789 = vmatprep.mubr.bf16.mxu0 0
      %1790 = vmatmul.mubr.bf16.gmra.mrb[0].mxu0 %v1663
      %v1791 = vpop.f32.mrb[0].mxu0
      %v1792 = vadd.f32 %v1699, %v1791
      %v1793 = vpop.f32.mrb[0].mxu0
      %v1794 = vpop.f32.mrb[0].mxu0
      %v1795 = vadd.f32 %v1699, %v1794
      %v1796 = vpop.f32.mrb[0].mxu0
      %1797 = vmatprep.mubr.bf16.mxu0 0
      %1798 = vmatmul.mubr.bf16.gmra.mrb[0].mxu0 %v1664
      %v1799 = vpop.f32.mrb[0].mxu0
      %v1800 = vadd.f32 %v1699, %v1799
      %v1801 = vpop.f32.mrb[0].mxu0
      %v1802 = vpop.f32.mrb[0].mxu0
      %v1803 = vadd.f32 %v1699, %v1802
      %v1804 = vpop.f32.mrb[0].mxu0
      %1805 = vmatprep.mubr.bf16.mxu0 0
      %1806 = vmatmul.mubr.bf16.gmra.mrb[0].mxu0 %v1665
      %v1807 = vpop.f32.mrb[0].mxu0
      %v1808 = vadd.f32 %v1699, %v1807
      %v1809 = vpop.f32.mrb[0].mxu0
      %v1810 = vpop.f32.mrb[0].mxu0
      %v1811 = vadd.f32 %v1699, %v1810
      %v1812 = vpop.f32.mrb[0].mxu0
      %1813 = vmatprep.mubr.bf16.mxu0 0
      %1814 = vmatmul.mubr.bf16.gmra.mrb[0].mxu0 %v1666
      %v1815 = vpop.f32.mrb[0].mxu0
      %v1816 = vadd.f32 %v1699, %v1815
      %v1817 = vpop.f32.mrb[0].mxu0
      %v1818 = vpop.f32.mrb[0].mxu0
      %v1819 = vadd.f32 %v1699, %v1818
      %v1820 = vpop.f32.mrb[0].mxu0
      %1821 = vmatprep.mubr.bf16.mxu0 0
      %1822 = vmatmul.mubr.bf16.gmra.mrb[0].mxu0 %v1667
      %v1823 = vpop.f32.mrb[0].mxu0
      %v1824 = vadd.f32 %v1699, %v1823
      %v1825 = vpop.f32.mrb[0].mxu0
      %v1826 = vpop.f32.mrb[0].mxu0
      %v1827 = vadd.f32 %v1699, %v1826
      %v1828 = vpop.f32.mrb[0].mxu0
      %1829 = vmatprep.mubr.bf16.mxu0 0
      %1830 = vmatmul.mubr.bf16.gmra.mrb[0].mxu0 %v1668
      %v1831 = vpop.f32.mrb[0].mxu0
      %v1832 = vadd.f32 %v1699, %v1831
      %v1833 = vpop.f32.mrb[0].mxu0
      %v1834 = vpop.f32.mrb[0].mxu0
      %v1835 = vadd.f32 %v1699, %v1834
      %v1836 = vpop.f32.mrb[0].mxu0
      %1837 = vmatprep.mubr.bf16.mxu0 0
      %1838 = vmatmul.mubr.bf16.gmra.mrb[0].mxu0 %v1669
      %v1839 = vpop.f32.mrb[0].mxu0
      %v1840 = vadd.f32 %v1699, %v1839
      %v1841 = vpop.f32.mrb[0].mxu0
      %v1842 = vpop.f32.mrb[0].mxu0
      %v1843 = vadd.f32 %v1699, %v1842
      %v1844 = vpop.f32.mrb[0].mxu0
      %1845 = vmatprep.mubr.bf16.mxu0 0
      %1846 = vmatmul.mubr.bf16.gmra.mrb[0].mxu0 %v1670
      %v1847 = vpop.f32.mrb[0].mxu0
      %v1848 = vadd.f32 %v1699, %v1847
      %v1849 = vpop.f32.mrb[0].mxu0
      %v1850 = vpop.f32.mrb[0].mxu0
      %v1851 = vadd.f32 %v1699, %v1850
      %v1852 = vpop.f32.mrb[0].mxu0
      %1853 = vmatprep.mubr.bf16.mxu0 0
      %1854 = vmatmul.mubr.bf16.gmra.mrb[0].mxu0 %v1671
      %v1855 = vpop.f32.mrb[0].mxu0
      %v1856 = vadd.f32 %v1699, %v1855
      %v1857 = vpop.f32.mrb[0].mxu0
      %v1858 = vpop.f32.mrb[0].mxu0
      %v1859 = vadd.f32 %v1699, %v1858
      %v1860 = vpop.f32.mrb[0].mxu0
      %1861 = vmatprep.mubr.bf16.mxu0 0
      %1862 = vmatmul.mubr.bf16.gmra.mrb[0].mxu0 %v1672
      %v1863 = vpop.f32.mrb[0].mxu0
      %v1864 = vadd.f32 %v1699, %v1863
      %v1865 = vpop.f32.mrb[0].mxu0
      %v1866 = vpop.f32.mrb[0].mxu0
      %v1867 = vadd.f32 %v1699, %v1866
      %v1868 = vpop.f32.mrb[0].mxu0
      %1869 = vmatprep.mubr.bf16.mxu0 0
      %1870 = vmatmul.mubr.bf16.gmra.mrb[0].mxu0 %v1673
      %v1871 = vpop.f32.mrb[0].mxu0
      %v1872 = vadd.f32 %v1699, %v1871
      %v1873 = vpop.f32.mrb[0].mxu0
      %v1874 = vpop.f32.mrb[0].mxu0
      %v1875 = vadd.f32 %v1699, %v1874
      %v1876 = vpop.f32.mrb[0].mxu0
      %1877 = vmatprep.mubr.bf16.mxu0 0
      %1878 = vmatmul.mubr.bf16.gmra.mrb[0].mxu0 %v1674
      %v1879 = vpop.f32.mrb[0].mxu0
      %v1880 = vadd.f32 %v1699, %v1879
      %v1881 = vpop.f32.mrb[0].mxu0
      %v1882 = vpop.f32.mrb[0].mxu0
      %v1883 = vadd.f32 %v1699, %v1882
      %v1884 = vpop.f32.mrb[0].mxu0
      %1885 = vmatprep.mubr.bf16.mxu0 0
      %1886 = vmatmul.mubr.bf16.gmra.mrb[0].mxu0 %v1675
      %v1887 = vpop.f32.mrb[0].mxu0
      %v1888 = vadd.f32 %v1699, %v1887
      %v1889 = vpop.f32.mrb[0].mxu0
      %v1890 = vpop.f32.mrb[0].mxu0
      %v1891 = vadd.f32 %v1699, %v1890
      %v1892 = vpop.f32.mrb[0].mxu0
      %1893 = vmatprep.mubr.bf16.mxu0 0
      %1894 = vmatmul.mubr.bf16.gmra.mrb[0].mxu0 %v1676
      %v1895 = vpop.f32.mrb[0].mxu0
      %v1896 = vadd.f32 %v1699, %v1895
      %v1897 = vpop.f32.mrb[0].mxu0
      %v1898 = vpop.f32.mrb[0].mxu0
      %v1899 = vadd.f32 %v1699, %v1898
      %v1900 = vpop.f32.mrb[0].mxu0
      %1901 = vmatprep.mubr.bf16.mxu0 0
      %1902 = vmatmul.mubr.bf16.gmra.mrb[0].mxu0 %v1677
      %v1903 = vpop.f32.mrb[0].mxu0
      %v1904 = vadd.f32 %v1699, %v1903
      %v1905 = vpop.f32.mrb[0].mxu0
      %v1906 = vpop.f32.mrb[0].mxu0
      %v1907 = vadd.f32 %v1699, %v1906
      %v1908 = vpop.f32.mrb[0].mxu0
      %1909 = vdwg.mxu0
      %v1910 = vmax.f32 %v1784, 0.0
      %v1911 = vmax.f32 %v1787, 0.0
      %v1912 = vmax.f32 %v1792, 0.0
      %v1913 = vmax.f32 %v1795, 0.0
      %v1914 = vmax.f32 %v1800, 0.0
      %v1915 = vmax.f32 %v1803, 0.0
      %v1916 = vmax.f32 %v1808, 0.0
      %v1917 = vmax.f32 %v1811, 0.0
      %v1918 = vmax.f32 %v1816, 0.0
      %v1919 = vmax.f32 %v1819, 0.0
      %v1920 = vmax.f32 %v1824, 0.0
      %v1921 = vmax.f32 %v1827, 0.0
      %v1922 = vmax.f32 %v1832, 0.0
      %v1923 = vmax.f32 %v1835, 0.0
      %v1924 = vmax.f32 %v1840, 0.0
      %v1925 = vmax.f32 %v1843, 0.0
      %v1926 = vmax.f32 %v1848, 0.0
      %v1927 = vmax.f32 %v1851, 0.0
      %v1928 = vmax.f32 %v1856, 0.0
      %v1929 = vmax.f32 %v1859, 0.0
      %v1930 = vmax.f32 %v1864, 0.0
      %v1931 = vmax.f32 %v1867, 0.0
      %v1932 = vmax.f32 %v1872, 0.0
      %v1933 = vmax.f32 %v1875, 0.0
      %v1934 = vmax.f32 %v1880, 0.0
      %v1935 = vmax.f32 %v1883, 0.0
      %v1936 = vmax.f32 %v1888, 0.0
      %v1937 = vmax.f32 %v1891, 0.0
      %v1938 = vmax.f32 %v1896, 0.0
      %v1939 = vmax.f32 %v1899, 0.0
      %v1940 = vmax.f32 %v1904, 0.0
      %v1941 = vmax.f32 %v1907, 0.0
      %v1942 = vpack.c.bf16 %v1911, %v1910
      %v1943 = vpack.c.bf16 %v1913, %v1912
      %v1944 = vpack.c.bf16 %v1915, %v1914
      %v1945 = vpack.c.bf16 %v1917, %v1916
      %v1946 = vpack.c.bf16 %v1919, %v1918
      %v1947 = vpack.c.bf16 %v1921, %v1920
      %v1948 = vpack.c.bf16 %v1923, %v1922
      %v1949 = vpack.c.bf16 %v1925, %v1924
      %v1950 = vpack.c.bf16 %v1927, %v1926
      %v1951 = vpack.c.bf16 %v1929, %v1928
      %v1952 = vpack.c.bf16 %v1931, %v1930
      %v1953 = vpack.c.bf16 %v1933, %v1932
      %v1954 = vpack.c.bf16 %v1935, %v1934
      %v1955 = vpack.c.bf16 %v1937, %v1936
      %v1956 = vpack.c.bf16 %v1939, %v1938
      %v1957 = vpack.c.bf16 %v1941, %v1940
      %v1958 = vld [vmem:[%s11] sm:$0xf]
      %v1959 = vld [vmem:[%s11 + $0x4] sm:$0xf]
      %v1960 = vld [vmem:[%s11 + $0x8] sm:$0xf]
      %v1961 = vld [vmem:[%s11 + $0xc] sm:$0xf]
      %v1962 = vld [vmem:[%s11 + $0x10] sm:$0xf]
      %v1963 = vld [vmem:[%s11 + $0x14] sm:$0xf]
      %v1964 = vld [vmem:[%s11 + $0x18] sm:$0xf]
      %v1965 = vld [vmem:[%s11 + $0x1c] sm:$0xf]
      %v1966 = vld [vmem:[%s12] sm:$0x1]
      %v1968 = vlaneseq
      %v1969 = vshrl.u32 %v1968, 7
      %v1970 = vsub.s32 0, %v1969
      %v1971 = vrot.slane %v1966, %v1970
      %v1981 = vunpack.c.l.b16 %v1958
      %v1982 = vunpack.c.l.b16 %v1959
      %v1983 = vunpack.c.l.b16 %v1960
      %v1984 = vunpack.c.l.b16 %v1961
      %v1985 = vunpack.c.l.b16 %v1962
      %v1986 = vunpack.c.l.b16 %v1963
      %v1987 = vunpack.c.l.b16 %v1964
      %v1988 = vunpack.c.l.b16 %v1965
      %v1989 = vpack.c.b16 %v1982, %v1981
      %v1990 = vpack.c.b16 %v1984, %v1983
      %v1991 = vpack.c.b16 %v1986, %v1985
      %v1992 = vpack.c.b16 %v1988, %v1987
      %v1998 = vsel %vm1140, %v1942, 0
      %v2001 = vsel %vm1140, %v1943, 0
      %v2004 = vsel %vm1140, %v1944, 0
      %v2007 = vsel %vm1140, %v1945, 0
      %v2010 = vsel %vm1140, %v1946, 0
      %v2013 = vsel %vm1140, %v1947, 0
      %v2016 = vsel %vm1140, %v1948, 0
      %v2019 = vsel %vm1140, %v1949, 0
      %v2022 = vsel %vm1140, %v1950, 0
      %v2025 = vsel %vm1140, %v1951, 0
      %v2028 = vsel %vm1140, %v1952, 0
      %v2031 = vsel %vm1140, %v1953, 0
      %v2034 = vsel %vm1140, %v1954, 0
      %v2037 = vsel %vm1140, %v1955, 0
      %v2040 = vsel %vm1140, %v1956, 0
      %v2043 = vsel %vm1140, %v1957, 0
      %2045 = vmatprep.subr.bf16.mxu0 0
      %2046 = vmatpush1.bf16.msra.mxu0 %v1989
      %2047 = vmatprep.subr.bf16.mxu0 0
      %2048 = vmatpush1.bf16.msra.mxu0 %v1990
      %2049 = vmatprep.subr.bf16.mxu0 0
      %2050 = vmatpush1.bf16.msra.mxu0 %v1991
      %2051 = vmatprep.subr.bf16.mxu0 0
      %2052 = vmatpush1.bf16.msra.mxu0 %v1992
      %2053 = vmatprep.subr.bf16.mxu0 0
      %2054 = vmatpush1.bf16.msra.mxu0 0
      %2055 = vmatprep.subr.bf16.mxu0 0
      %2056 = vmatpush1.bf16.msra.mxu0 0
      %2057 = vmatprep.subr.bf16.mxu0 0
      %2058 = vmatpush1.bf16.msra.mxu0 0
      %2059 = vmatprep.subr.bf16.mxu0 0
      %2060 = vmatpush1.bf16.msra.mxu0 0
      %2061 = vmatprep.subr.bf16.mxu0 0
      %2062 = vmatpush1.bf16.msra.mxu0 0
      %2063 = vmatprep.subr.bf16.mxu0 0
      %2064 = vmatpush1.bf16.msra.mxu0 0
      %2065 = vmatprep.subr.bf16.mxu0 0
      %2066 = vmatpush1.bf16.msra.mxu0 0
      %2067 = vmatprep.subr.bf16.mxu0 0
      %2068 = vmatpush1.bf16.msra.mxu0 0
      %2069 = vmatprep.subr.bf16.mxu0 0
      %2070 = vmatpush1.bf16.msra.mxu0 0
      %2071 = vmatprep.subr.bf16.mxu0 0
      %2072 = vmatpush1.bf16.msra.mxu0 0
      %2073 = vmatprep.subr.bf16.mxu0 0
      %2074 = vmatpush1.bf16.msra.mxu0 0
      %2075 = vmatprep.subr.bf16.mxu0 0
      %2076 = vmatpush1.bf16.msra.mxu0 0
      %2077 = vmatprep.mubr.bf16.mxu0 0
      %2078 = vmatmul.mubr.bf16.gmra.mrb[0].mxu0 %v1998
      %v2079 = vpop.f32.mrb[0].mxu0
      %v2080 = vadd.f32 %v1971, %v2079
      %v2081 = vpop.f32.mrb[0].mxu0
      %v2082 = vpop.f32.mrb[0].mxu0
      %v2083 = vadd.f32 %v1971, %v2082
      %v2084 = vpop.f32.mrb[0].mxu0
      %2085 = vmatprep.mubr.bf16.mxu0 0
      %2086 = vmatmul.mubr.bf16.gmra.mrb[0].mxu0 %v2001
      %v2087 = vpop.f32.mrb[0].mxu0
      %v2088 = vadd.f32 %v1971, %v2087
      %v2089 = vpop.f32.mrb[0].mxu0
      %v2090 = vpop.f32.mrb[0].mxu0
      %v2091 = vadd.f32 %v1971, %v2090
      %v2092 = vpop.f32.mrb[0].mxu0
      %2093 = vmatprep.mubr.bf16.mxu0 0
      %2094 = vmatmul.mubr.bf16.gmra.mrb[0].mxu0 %v2004
      %v2095 = vpop.f32.mrb[0].mxu0
      %v2096 = vadd.f32 %v1971, %v2095
      %v2097 = vpop.f32.mrb[0].mxu0
      %v2098 = vpop.f32.mrb[0].mxu0
      %v2099 = vadd.f32 %v1971, %v2098
      %v2100 = vpop.f32.mrb[0].mxu0
      %2101 = vmatprep.mubr.bf16.mxu0 0
      %2102 = vmatmul.mubr.bf16.gmra.mrb[0].mxu0 %v2007
      %v2103 = vpop.f32.mrb[0].mxu0
      %v2104 = vadd.f32 %v1971, %v2103
      %v2105 = vpop.f32.mrb[0].mxu0
      %v2106 = vpop.f32.mrb[0].mxu0
      %v2107 = vadd.f32 %v1971, %v2106
      %v2108 = vpop.f32.mrb[0].mxu0
      %2109 = vmatprep.mubr.bf16.mxu0 0
      %2110 = vmatmul.mubr.bf16.gmra.mrb[0].mxu0 %v2010
      %v2111 = vpop.f32.mrb[0].mxu0
      %v2112 = vadd.f32 %v1971, %v2111
      %v2113 = vpop.f32.mrb[0].mxu0
      %v2114 = vpop.f32.mrb[0].mxu0
      %v2115 = vadd.f32 %v1971, %v2114
      %v2116 = vpop.f32.mrb[0].mxu0
      %2117 = vmatprep.mubr.bf16.mxu0 0
      %2118 = vmatmul.mubr.bf16.gmra.mrb[0].mxu0 %v2013
      %v2119 = vpop.f32.mrb[0].mxu0
      %v2120 = vadd.f32 %v1971, %v2119
      %v2121 = vpop.f32.mrb[0].mxu0
      %v2122 = vpop.f32.mrb[0].mxu0
      %v2123 = vadd.f32 %v1971, %v2122
      %v2124 = vpop.f32.mrb[0].mxu0
      %2125 = vmatprep.mubr.bf16.mxu0 0
      %2126 = vmatmul.mubr.bf16.gmra.mrb[0].mxu0 %v2016
      %v2127 = vpop.f32.mrb[0].mxu0
      %v2128 = vadd.f32 %v1971, %v2127
      %v2129 = vpop.f32.mrb[0].mxu0
      %v2130 = vpop.f32.mrb[0].mxu0
      %v2131 = vadd.f32 %v1971, %v2130
      %v2132 = vpop.f32.mrb[0].mxu0
      %2133 = vmatprep.mubr.bf16.mxu0 0
      %2134 = vmatmul.mubr.bf16.gmra.mrb[0].mxu0 %v2019
      %v2135 = vpop.f32.mrb[0].mxu0
      %v2136 = vadd.f32 %v1971, %v2135
      %v2137 = vpop.f32.mrb[0].mxu0
      %v2138 = vpop.f32.mrb[0].mxu0
      %v2139 = vadd.f32 %v1971, %v2138
      %v2140 = vpop.f32.mrb[0].mxu0
      %2141 = vmatprep.mubr.bf16.mxu0 0
      %2142 = vmatmul.mubr.bf16.gmra.mrb[0].mxu0 %v2022
      %v2143 = vpop.f32.mrb[0].mxu0
      %v2144 = vadd.f32 %v1971, %v2143
      %v2145 = vpop.f32.mrb[0].mxu0
      %v2146 = vpop.f32.mrb[0].mxu0
      %v2147 = vadd.f32 %v1971, %v2146
      %v2148 = vpop.f32.mrb[0].mxu0
      %2149 = vmatprep.mubr.bf16.mxu0 0
      %2150 = vmatmul.mubr.bf16.gmra.mrb[0].mxu0 %v2025
      %v2151 = vpop.f32.mrb[0].mxu0
      %v2152 = vadd.f32 %v1971, %v2151
      %v2153 = vpop.f32.mrb[0].mxu0
      %v2154 = vpop.f32.mrb[0].mxu0
      %v2155 = vadd.f32 %v1971, %v2154
      %v2156 = vpop.f32.mrb[0].mxu0
      %2157 = vmatprep.mubr.bf16.mxu0 0
      %2158 = vmatmul.mubr.bf16.gmra.mrb[0].mxu0 %v2028
      %v2159 = vpop.f32.mrb[0].mxu0
      %v2160 = vadd.f32 %v1971, %v2159
      %v2161 = vpop.f32.mrb[0].mxu0
      %v2162 = vpop.f32.mrb[0].mxu0
      %v2163 = vadd.f32 %v1971, %v2162
      %v2164 = vpop.f32.mrb[0].mxu0
      %2165 = vmatprep.mubr.bf16.mxu0 0
      %2166 = vmatmul.mubr.bf16.gmra.mrb[0].mxu0 %v2031
      %v2167 = vpop.f32.mrb[0].mxu0
      %v2168 = vadd.f32 %v1971, %v2167
      %v2169 = vpop.f32.mrb[0].mxu0
      %v2170 = vpop.f32.mrb[0].mxu0
      %v2171 = vadd.f32 %v1971, %v2170
      %v2172 = vpop.f32.mrb[0].mxu0
      %2173 = vmatprep.mubr.bf16.mxu0 0
      %2174 = vmatmul.mubr.bf16.gmra.mrb[0].mxu0 %v2034
      %v2175 = vpop.f32.mrb[0].mxu0
      %v2176 = vadd.f32 %v1971, %v2175
      %v2177 = vpop.f32.mrb[0].mxu0
      %v2178 = vpop.f32.mrb[0].mxu0
      %v2179 = vadd.f32 %v1971, %v2178
      %v2180 = vpop.f32.mrb[0].mxu0
      %2181 = vmatprep.mubr.bf16.mxu0 0
      %2182 = vmatmul.mubr.bf16.gmra.mrb[0].mxu0 %v2037
      %v2183 = vpop.f32.mrb[0].mxu0
      %v2184 = vadd.f32 %v1971, %v2183
      %v2185 = vpop.f32.mrb[0].mxu0
      %v2186 = vpop.f32.mrb[0].mxu0
      %v2187 = vadd.f32 %v1971, %v2186
      %v2188 = vpop.f32.mrb[0].mxu0
      %2189 = vmatprep.mubr.bf16.mxu0 0
      %2190 = vmatmul.mubr.bf16.gmra.mrb[0].mxu0 %v2040
      %v2191 = vpop.f32.mrb[0].mxu0
      %v2192 = vadd.f32 %v1971, %v2191
      %v2193 = vpop.f32.mrb[0].mxu0
      %v2194 = vpop.f32.mrb[0].mxu0
      %v2195 = vadd.f32 %v1971, %v2194
      %v2196 = vpop.f32.mrb[0].mxu0
      %2197 = vmatprep.mubr.bf16.mxu0 0
      %2198 = vmatmul.mubr.bf16.gmra.mrb[0].mxu0 %v2043
      %v2199 = vpop.f32.mrb[0].mxu0
      %v2200 = vadd.f32 %v1971, %v2199
      %v2201 = vpop.f32.mrb[0].mxu0
      %v2202 = vpop.f32.mrb[0].mxu0
      %v2203 = vadd.f32 %v1971, %v2202
      %v2204 = vpop.f32.mrb[0].mxu0
      %2205 = vdwg.mxu0
      %v2206 = vmax.f32 %v2080, 0.0
      %v2207 = vmax.f32 %v2083, 0.0
      %v2208 = vmax.f32 %v2088, 0.0
      %v2209 = vmax.f32 %v2091, 0.0
      %v2210 = vmax.f32 %v2096, 0.0
      %v2211 = vmax.f32 %v2099, 0.0
      %v2212 = vmax.f32 %v2104, 0.0
      %v2213 = vmax.f32 %v2107, 0.0
      %v2214 = vmax.f32 %v2112, 0.0
      %v2215 = vmax.f32 %v2115, 0.0
      %v2216 = vmax.f32 %v2120, 0.0
      %v2217 = vmax.f32 %v2123, 0.0
      %v2218 = vmax.f32 %v2128, 0.0
      %v2219 = vmax.f32 %v2131, 0.0
      %v2220 = vmax.f32 %v2136, 0.0
      %v2221 = vmax.f32 %v2139, 0.0
      %v2222 = vmax.f32 %v2144, 0.0
      %v2223 = vmax.f32 %v2147, 0.0
      %v2224 = vmax.f32 %v2152, 0.0
      %v2225 = vmax.f32 %v2155, 0.0
      %v2226 = vmax.f32 %v2160, 0.0
      %v2227 = vmax.f32 %v2163, 0.0
      %v2228 = vmax.f32 %v2168, 0.0
      %v2229 = vmax.f32 %v2171, 0.0
      %v2230 = vmax.f32 %v2176, 0.0
      %v2231 = vmax.f32 %v2179, 0.0
      %v2232 = vmax.f32 %v2184, 0.0
      %v2233 = vmax.f32 %v2187, 0.0
      %v2234 = vmax.f32 %v2192, 0.0
      %v2235 = vmax.f32 %v2195, 0.0
      %v2236 = vmax.f32 %v2200, 0.0
      %v2237 = vmax.f32 %v2203, 0.0
      %v2238 = vpack.c.bf16 %v2207, %v2206
      %v2239 = vpack.c.bf16 %v2209, %v2208
      %v2240 = vpack.c.bf16 %v2211, %v2210
      %v2241 = vpack.c.bf16 %v2213, %v2212
      %v2242 = vpack.c.bf16 %v2215, %v2214
      %v2243 = vpack.c.bf16 %v2217, %v2216
      %v2244 = vpack.c.bf16 %v2219, %v2218
      %v2245 = vpack.c.bf16 %v2221, %v2220
      %v2246 = vpack.c.bf16 %v2223, %v2222
      %v2247 = vpack.c.bf16 %v2225, %v2224
      %v2248 = vpack.c.bf16 %v2227, %v2226
      %v2249 = vpack.c.bf16 %v2229, %v2228
      %v2250 = vpack.c.bf16 %v2231, %v2230
      %v2251 = vpack.c.bf16 %v2233, %v2232
      %v2252 = vpack.c.bf16 %v2235, %v2234
      %v2253 = vpack.c.bf16 %v2237, %v2236
      %v2254 = vld [vmem:[%s13] sm:$0xf]
      %v2255 = vld [vmem:[%s13 + $0x4] sm:$0xf]
      %v2256 = vld [vmem:[%s13 + $0x8] sm:$0xf]
      %v2257 = vld [vmem:[%s13 + $0xc] sm:$0xf]
      %v2258 = vld [vmem:[%s14] sm:$0x1]
      %v2260 = vlaneseq
      %v2261 = vshrl.u32 %v2260, 7
      %v2262 = vsub.s32 0, %v2261
      %v2263 = vrot.slane %v2258, %v2262
      %v2269 = vunpack.c.l.b16 %v2254
      %v2270 = vunpack.c.l.b16 %v2255
      %v2271 = vunpack.c.l.b16 %v2256
      %v2272 = vunpack.c.l.b16 %v2257
      %v2273 = vpack.c.b16 %v2270, %v2269
      %v2274 = vpack.c.b16 %v2272, %v2271
      %v2278 = vsel %vm843, %v2238, 0
      %v2281 = vsel %vm843, %v2239, 0
      %v2284 = vsel %vm843, %v2240, 0
      %v2287 = vsel %vm843, %v2241, 0
      %v2290 = vsel %vm843, %v2242, 0
      %v2293 = vsel %vm843, %v2243, 0
      %v2296 = vsel %vm843, %v2244, 0
      %v2299 = vsel %vm843, %v2245, 0
      %v2302 = vsel %vm843, %v2246, 0
      %v2305 = vsel %vm843, %v2247, 0
      %v2308 = vsel %vm843, %v2248, 0
      %v2311 = vsel %vm843, %v2249, 0
      %v2314 = vsel %vm843, %v2250, 0
      %v2317 = vsel %vm843, %v2251, 0
      %v2320 = vsel %vm843, %v2252, 0
      %v2323 = vsel %vm843, %v2253, 0
      %2325 = vmatprep.subr.bf16.mxu0 0
      %2326 = vmatpush1.bf16.msra.mxu0 %v2273
      %2327 = vmatprep.subr.bf16.mxu0 0
      %2328 = vmatpush1.bf16.msra.mxu0 %v2274
      %2329 = vmatprep.subr.bf16.mxu0 0
      %2330 = vmatpush1.bf16.msra.mxu0 0
      %2331 = vmatprep.subr.bf16.mxu0 0
      %2332 = vmatpush1.bf16.msra.mxu0 0
      %2333 = vmatprep.subr.bf16.mxu0 0
      %2334 = vmatpush1.bf16.msra.mxu0 0
      %2335 = vmatprep.subr.bf16.mxu0 0
      %2336 = vmatpush1.bf16.msra.mxu0 0
      %2337 = vmatprep.subr.bf16.mxu0 0
      %2338 = vmatpush1.bf16.msra.mxu0 0
      %2339 = vmatprep.subr.bf16.mxu0 0
      %2340 = vmatpush1.bf16.msra.mxu0 0
      %2341 = vmatprep.subr.bf16.mxu0 0
      %2342 = vmatpush1.bf16.msra.mxu0 0
      %2343 = vmatprep.subr.bf16.mxu0 0
      %2344 = vmatpush1.bf16.msra.mxu0 0
      %2345 = vmatprep.subr.bf16.mxu0 0
      %2346 = vmatpush1.bf16.msra.mxu0 0
      %2347 = vmatprep.subr.bf16.mxu0 0
      %2348 = vmatpush1.bf16.msra.mxu0 0
      %2349 = vmatprep.subr.bf16.mxu0 0
      %2350 = vmatpush1.bf16.msra.mxu0 0
      %2351 = vmatprep.subr.bf16.mxu0 0
      %2352 = vmatpush1.bf16.msra.mxu0 0
      %2353 = vmatprep.subr.bf16.mxu0 0
      %2354 = vmatpush1.bf16.msra.mxu0 0
      %2355 = vmatprep.subr.bf16.mxu0 0
      %2356 = vmatpush1.bf16.msra.mxu0 0
      %2357 = vmatprep.mubr.bf16.mxu0 0
      %2358 = vmatmul.mubr.bf16.gmra.mrb[0].mxu0 %v2278
      %v2359 = vpop.f32.mrb[0].mxu0
      %v2360 = vadd.f32 %v2263, %v2359
      %v2361 = vpop.f32.mrb[0].mxu0
      %v2362 = vpop.f32.mrb[0].mxu0
      %v2363 = vadd.f32 %v2263, %v2362
      %v2364 = vpop.f32.mrb[0].mxu0
      %2365 = vmatprep.mubr.bf16.mxu0 0
      %2366 = vmatmul.mubr.bf16.gmra.mrb[0].mxu0 %v2281
      %v2367 = vpop.f32.mrb[0].mxu0
      %v2368 = vadd.f32 %v2263, %v2367
      %v2369 = vpop.f32.mrb[0].mxu0
      %v2370 = vpop.f32.mrb[0].mxu0
      %v2371 = vadd.f32 %v2263, %v2370
      %v2372 = vpop.f32.mrb[0].mxu0
      %2373 = vmatprep.mubr.bf16.mxu0 0
      %2374 = vmatmul.mubr.bf16.gmra.mrb[0].mxu0 %v2284
      %v2375 = vpop.f32.mrb[0].mxu0
      %v2376 = vadd.f32 %v2263, %v2375
      %v2377 = vpop.f32.mrb[0].mxu0
      %v2378 = vpop.f32.mrb[0].mxu0
      %v2379 = vadd.f32 %v2263, %v2378
      %v2380 = vpop.f32.mrb[0].mxu0
      %2381 = vmatprep.mubr.bf16.mxu0 0
      %2382 = vmatmul.mubr.bf16.gmra.mrb[0].mxu0 %v2287
      %v2383 = vpop.f32.mrb[0].mxu0
      %v2384 = vadd.f32 %v2263, %v2383
      %v2385 = vpop.f32.mrb[0].mxu0
      %v2386 = vpop.f32.mrb[0].mxu0
      %v2387 = vadd.f32 %v2263, %v2386
      %v2388 = vpop.f32.mrb[0].mxu0
      %2389 = vmatprep.mubr.bf16.mxu0 0
      %2390 = vmatmul.mubr.bf16.gmra.mrb[0].mxu0 %v2290
      %v2391 = vpop.f32.mrb[0].mxu0
      %v2392 = vadd.f32 %v2263, %v2391
      %v2393 = vpop.f32.mrb[0].mxu0
      %v2394 = vpop.f32.mrb[0].mxu0
      %v2395 = vadd.f32 %v2263, %v2394
      %v2396 = vpop.f32.mrb[0].mxu0
      %2397 = vmatprep.mubr.bf16.mxu0 0
      %2398 = vmatmul.mubr.bf16.gmra.mrb[0].mxu0 %v2293
      %v2399 = vpop.f32.mrb[0].mxu0
      %v2400 = vadd.f32 %v2263, %v2399
      %v2401 = vpop.f32.mrb[0].mxu0
      %v2402 = vpop.f32.mrb[0].mxu0
      %v2403 = vadd.f32 %v2263, %v2402
      %v2404 = vpop.f32.mrb[0].mxu0
      %2405 = vmatprep.mubr.bf16.mxu0 0
      %2406 = vmatmul.mubr.bf16.gmra.mrb[0].mxu0 %v2296
      %v2407 = vpop.f32.mrb[0].mxu0
      %v2408 = vadd.f32 %v2263, %v2407
      %v2409 = vpop.f32.mrb[0].mxu0
      %v2410 = vpop.f32.mrb[0].mxu0
      %v2411 = vadd.f32 %v2263, %v2410
      %v2412 = vpop.f32.mrb[0].mxu0
      %2413 = vmatprep.mubr.bf16.mxu0 0
      %2414 = vmatmul.mubr.bf16.gmra.mrb[0].mxu0 %v2299
      %v2415 = vpop.f32.mrb[0].mxu0
      %v2416 = vadd.f32 %v2263, %v2415
      %v2417 = vpop.f32.mrb[0].mxu0
      %v2418 = vpop.f32.mrb[0].mxu0
      %v2419 = vadd.f32 %v2263, %v2418
      %v2420 = vpop.f32.mrb[0].mxu0
      %2421 = vmatprep.mubr.bf16.mxu0 0
      %2422 = vmatmul.mubr.bf16.gmra.mrb[0].mxu0 %v2302
      %v2423 = vpop.f32.mrb[0].mxu0
      %v2424 = vadd.f32 %v2263, %v2423
      %v2425 = vpop.f32.mrb[0].mxu0
      %v2426 = vpop.f32.mrb[0].mxu0
      %v2427 = vadd.f32 %v2263, %v2426
      %v2428 = vpop.f32.mrb[0].mxu0
      %2429 = vmatprep.mubr.bf16.mxu0 0
      %2430 = vmatmul.mubr.bf16.gmra.mrb[0].mxu0 %v2305
      %v2431 = vpop.f32.mrb[0].mxu0
      %v2432 = vadd.f32 %v2263, %v2431
      %v2433 = vpop.f32.mrb[0].mxu0
      %v2434 = vpop.f32.mrb[0].mxu0
      %v2435 = vadd.f32 %v2263, %v2434
      %v2436 = vpop.f32.mrb[0].mxu0
      %2437 = vmatprep.mubr.bf16.mxu0 0
      %2438 = vmatmul.mubr.bf16.gmra.mrb[0].mxu0 %v2308
      %v2439 = vpop.f32.mrb[0].mxu0
      %v2440 = vadd.f32 %v2263, %v2439
      %v2441 = vpop.f32.mrb[0].mxu0
      %v2442 = vpop.f32.mrb[0].mxu0
      %v2443 = vadd.f32 %v2263, %v2442
      %v2444 = vpop.f32.mrb[0].mxu0
      %2445 = vmatprep.mubr.bf16.mxu0 0
      %2446 = vmatmul.mubr.bf16.gmra.mrb[0].mxu0 %v2311
      %v2447 = vpop.f32.mrb[0].mxu0
      %v2448 = vadd.f32 %v2263, %v2447
      %v2449 = vpop.f32.mrb[0].mxu0
      %v2450 = vpop.f32.mrb[0].mxu0
      %v2451 = vadd.f32 %v2263, %v2450
      %v2452 = vpop.f32.mrb[0].mxu0
      %2453 = vmatprep.mubr.bf16.mxu0 0
      %2454 = vmatmul.mubr.bf16.gmra.mrb[0].mxu0 %v2314
      %v2455 = vpop.f32.mrb[0].mxu0
      %v2456 = vadd.f32 %v2263, %v2455
      %v2457 = vpop.f32.mrb[0].mxu0
      %v2458 = vpop.f32.mrb[0].mxu0
      %v2459 = vadd.f32 %v2263, %v2458
      %v2460 = vpop.f32.mrb[0].mxu0
      %2461 = vmatprep.mubr.bf16.mxu0 0
      %2462 = vmatmul.mubr.bf16.gmra.mrb[0].mxu0 %v2317
      %v2463 = vpop.f32.mrb[0].mxu0
      %v2464 = vadd.f32 %v2263, %v2463
      %v2465 = vpop.f32.mrb[0].mxu0
      %v2466 = vpop.f32.mrb[0].mxu0
      %v2467 = vadd.f32 %v2263, %v2466
      %v2468 = vpop.f32.mrb[0].mxu0
      %2469 = vmatprep.mubr.bf16.mxu0 0
      %2470 = vmatmul.mubr.bf16.gmra.mrb[0].mxu0 %v2320
      %v2471 = vpop.f32.mrb[0].mxu0
      %v2472 = vadd.f32 %v2263, %v2471
      %v2473 = vpop.f32.mrb[0].mxu0
      %v2474 = vpop.f32.mrb[0].mxu0
      %v2475 = vadd.f32 %v2263, %v2474
      %v2476 = vpop.f32.mrb[0].mxu0
      %2477 = vmatprep.mubr.bf16.mxu0 0
      %2478 = vmatmul.mubr.bf16.gmra.mrb[0].mxu0 %v2323
      %v2479 = vpop.f32.mrb[0].mxu0
      %v2480 = vadd.f32 %v2263, %v2479
      %v2481 = vpop.f32.mrb[0].mxu0
      %v2482 = vpop.f32.mrb[0].mxu0
      %v2483 = vadd.f32 %v2263, %v2482
      %v2484 = vpop.f32.mrb[0].mxu0
      %2485 = vdwg.mxu0
      %vm2486 = vcmask 31744
      %2487 = vst.msk [vmem:[%s496] sm:$0xff] %vm2486, %v2360
      %2488 = vst.msk [vmem:[%s496 + $0x8] sm:$0xff] %vm2486, %v2363
      %2489 = vst.msk [vmem:[%s496 + $0x10] sm:$0xff] %vm2486, %v2368
      %2490 = vst.msk [vmem:[%s496 + $0x18] sm:$0xff] %vm2486, %v2371
      %2491 = vst.msk [vmem:[%s496 + $0x20] sm:$0xff] %vm2486, %v2376
      %2492 = vst.msk [vmem:[%s496 + $0x28] sm:$0xff] %vm2486, %v2379
      %2493 = vst.msk [vmem:[%s496 + $0x30] sm:$0xff] %vm2486, %v2384
      %2494 = vst.msk [vmem:[%s496 + $0x38] sm:$0xff] %vm2486, %v2387
      %2495 = vst.msk [vmem:[%s496 + $0x40] sm:$0xff] %vm2486, %v2392
      %2496 = vst.msk [vmem:[%s496 + $0x48] sm:$0xff] %vm2486, %v2395
      %2497 = vst.msk [vmem:[%s496 + $0x50] sm:$0xff] %vm2486, %v2400
      %2498 = vst.msk [vmem:[%s496 + $0x58] sm:$0xff] %vm2486, %v2403
      %2499 = vst.msk [vmem:[%s496 + $0x60] sm:$0xff] %vm2486, %v2408
      %2500 = vst.msk [vmem:[%s496 + $0x68] sm:$0xff] %vm2486, %v2411
      %2501 = vst.msk [vmem:[%s496 + $0x70] sm:$0xff] %vm2486, %v2416
      %2502 = vst.msk [vmem:[%s496 + $0x78] sm:$0xff] %vm2486, %v2419
      %2503 = vst.msk [vmem:[%s496 + $0x80] sm:$0xff] %vm2486, %v2424
      %2504 = vst.msk [vmem:[%s496 + $0x88] sm:$0xff] %vm2486, %v2427
      %2505 = vst.msk [vmem:[%s496 + $0x90] sm:$0xff] %vm2486, %v2432
      %2506 = vst.msk [vmem:[%s496 + $0x98] sm:$0xff] %vm2486, %v2435
      %2507 = vst.msk [vmem:[%s496 + $0xa0] sm:$0xff] %vm2486, %v2440
      %2508 = vst.msk [vmem:[%s496 + $0xa8] sm:$0xff] %vm2486, %v2443
      %2509 = vst.msk [vmem:[%s496 + $0xb0] sm:$0xff] %vm2486, %v2448
      %2510 = vst.msk [vmem:[%s496 + $0xb8] sm:$0xff] %vm2486, %v2451
      %2511 = vst.msk [vmem:[%s496 + $0xc0] sm:$0xff] %vm2486, %v2456
      %2512 = vst.msk [vmem:[%s496 + $0xc8] sm:$0xff] %vm2486, %v2459
      %2513 = vst.msk [vmem:[%s496 + $0xd0] sm:$0xff] %vm2486, %v2464
      %2514 = vst.msk [vmem:[%s496 + $0xd8] sm:$0xff] %vm2486, %v2467
      %2515 = vst.msk [vmem:[%s496 + $0xe0] sm:$0xff] %vm2486, %v2472
      %2516 = vst.msk [vmem:[%s496 + $0xe8] sm:$0xff] %vm2486, %v2475
      %2517 = vst.msk [vmem:[%s496 + $0xf0] sm:$0xff] %vm2486, %v2480
      %2518 = vst.msk [vmem:[%s496 + $0xf8] sm:$0xff] %vm2486, %v2483
      %s2519 = smul.u32 32, %s26
      %p2520 = scmp.lt.s32.totalorder %s2519, 63
      %s2521 = scalar_select %p2520, %s2519, 63
      %s2522 = smul.addr %s2521, 8
      %s2523 = scalar_lea.vmem %s15, %s2522
      // Predicated region
      $region81: #{tpu_custom_call.1} parent=79 // pred_check
        %p2524 = pneg %p364
      $region82: #{tpu_custom_call.1} parent=79 // pred_check_branch
        %2526 = sbr.rel (%p2524) target = $region84
      $region83: #{tpu_custom_call.1} parent=79 // pred_region
        %s2527 = smul.u32 32, %s26
      $region84: #{tpu_custom_call.1} parent=79 // pred_fallthru
        _
    $region80: #{tpu_custom_call.1} parent=5 // pred_fallthru
      _
    %p2528 = scmp.le.s32.totalorder 2, %s21
    // Predicated region
    $region85: #{tpu_custom_call.1} parent=5 // pred_check
      %p2529 = pneg %p2528
    $region86: #{tpu_custom_call.1} parent=5 // pred_check_branch
      %2531 = sbr.rel (%p2529) target = $region88
    $region87: #{tpu_custom_call.1} parent=5 // pred_region
      %s2532 = ssub.s32 %s21, 2
      // Predicated region
      $region89: #{tpu_custom_call.1} parent=87 // pred_check
        %p2533 = pneg %p370
      $region90: #{tpu_custom_call.1} parent=87 // pred_check_branch
        %2535 = sbr.rel (%p2533) target = $region92
      $region91: #{tpu_custom_call.1} parent=87 // pred_region
        %s2536 = smul.u32 32, %s27
        %p2537 = scmp.lt.s32.totalorder %s2536, 63
        %s2538 = scalar_select %p2537, %s2536, 63
        %s2539 = smul.addr %s2538, 8
        %s2540 = scalar_lea.vmem %s15, %s2539
      $region92: #{tpu_custom_call.1} parent=87 // pred_fallthru
        _
    $region88: #{tpu_custom_call.1} parent=5 // pred_fallthru
      _
  $region6: #{tpu_custom_call.1} parent=0 // loop_footer
    %s25 = sadd.s32 1, %s21
  $region7: #{tpu_custom_call.1} parent=0 // loop_footer_branch
    %20 = sbr.rel target = $region3
  $region8: #{tpu_custom_call.1} parent=0 // loop_exit
    _

</llo_original>
